<compile_context>
chip_gen: v5e
topology: v5e:2x2
jax: 0.10.0
libtpu: 0.0.40
codegen_flags: <defaults>
</compile_context>

<pallas_src>
import functools
import math

import jax
import jax.numpy as jnp
from jax.experimental import pallas as pl
from jax.experimental.pallas import tpu as pltpu

BN_EPS = 1e-5                      # PyTorch BatchNorm2d default eps
VMEM_LIMIT = 32 * 1024 * 1024      # safe on v5e/v6e (128 MiB) and v7x (64 MiB)


# ---------------------------------------------------------------------------
# Kernel 1: fused  [all-layer conv_down + residual 1x1]  GEMM  +  T-mean
#   x_n (Cin, TV)  ->  [x_down rows (relu'd) ; residual rows]  and  mean over T
# ---------------------------------------------------------------------------
def _down_res_kernel(x_ref, w_ref, m_ref, xd_ref, res_ref, xm_ref, *, n_down):
    acc = jnp.dot(w_ref[...], x_ref[...],
                  preferred_element_type=jnp.float32)          # (R, TV) f32
    xd = jnp.maximum(acc[:n_down, :], 0.0)                     # conv_down rows: ReLU
    xd_bf16 = xd.astype(jnp.bfloat16)
    xd_ref[...] = xd_bf16                                      # (L*inter, TV)
    res_ref[...] = acc[n_down:, :].astype(res_ref.dtype)       # residual rows (no ReLU)
    # EdgeConv temporal mean as a matmul with the fixed (TV, V) averaging matrix.
    xm_ref[...] = jnp.dot(xd_bf16, m_ref[...],
                          preferred_element_type=jnp.float32)  # (L*inter, V)


def _down_res_call(x_flat, w1, mmat, L, inter, Cout, TV, V):
    N, Cin, _ = x_flat.shape
    R = L * inter + Cout
    kernel = functools.partial(_down_res_kernel, n_down=L * inter)
    return pl.pallas_call(
        kernel,
        out_shape=(
            jax.ShapeDtypeStruct((N, L * inter, TV), jnp.bfloat16),
            jax.ShapeDtypeStruct((N, Cout, TV), jnp.bfloat16),
            jax.ShapeDtypeStruct((N, L * inter, V), jnp.float32),
        ),
        grid_spec=pltpu.PrefetchScalarGridSpec(
            num_scalar_prefetch=0,
            grid=(N,),
            in_specs=[
                pl.BlockSpec((None, Cin, TV), lambda n: (n, 0, 0)),
                pl.BlockSpec((R, Cin), lambda n: (0, 0)),
                pl.BlockSpec((TV, V), lambda n: (0, 0)),
            ],
            out_specs=(
                pl.BlockSpec((None, L * inter, TV), lambda n: (n, 0, 0)),
                pl.BlockSpec((None, Cout, TV), lambda n: (n, 0, 0)),
                pl.BlockSpec((None, L * inter, V), lambda n: (n, 0, 0)),
            ),
        ),
        compiler_params=pltpu.CompilerParams(
            dimension_semantics=("parallel",),
            vmem_limit_bytes=VMEM_LIMIT),
    )(x_flat, w1, mmat)


# ---------------------------------------------------------------------------
# Kernel 2: fused graph branch (adjacency + subset conv, reduced over l, s in
# VMEM) + EdgeConv conv/LeakyReLU/max-k (added at s == 0) + final BN/res/ReLU.
# grid = (N, L, S); output block depends only on n -> resident f32 accumulator.
# ---------------------------------------------------------------------------
def _graph_edge_kernel(xd_ref, res_ref, ak_ref, ws_ref, f_ref, we_ref, bc_ref,
                       out_ref, acc_ref, *, n_k, final_scale):
    l = pl.program_id(1)
    s = pl.program_id(2)

    @pl.when(jnp.logical_and(l == 0, s == 0))
    def _init():
        acc_ref[...] = jnp.zeros_like(acc_ref)

    # EdgeConv branch, once per (n, l): conv 1x1 + BN + LeakyReLU(0.2), max over k,
    # broadcast over T via the fixed (V, TV) selection matrix (reshape-free).
    @pl.when(s == 0)
    def _edge():
        f = f_ref[...]                                   # (k, 2*inter, V) bf16
        we = we_ref[...]                                 # (inter, 2*inter) bf16
        e = jnp.dot(we, f[0], preferred_element_type=jnp.float32)
        e = jnp.where(e >= 0.0, e, 0.2 * e)
        for kk in range(1, n_k):
            y = jnp.dot(we, f[kk], preferred_element_type=jnp.float32)
            y = jnp.where(y >= 0.0, y, 0.2 * y)
            e = jnp.maximum(e, y)
        acc_ref[...] += jnp.dot(e.astype(jnp.bfloat16), bc_ref[...],
                                preferred_element_type=jnp.float32)   # (Cout, TV)

    # Graph branch: z = x_down · (I_T (x) A^T), then subset 1x1 conv (+BN folded).
    z = jnp.dot(xd_ref[...], ak_ref[...],
                preferred_element_type=jnp.float32)                    # (inter, TV)
    acc_ref[...] += jnp.dot(ws_ref[...], z.astype(jnp.bfloat16),
                            preferred_element_type=jnp.float32)        # (Cout, TV)

    @pl.when(jnp.logical_and(l == pl.num_programs(1) - 1,
                             s == pl.num_programs(2) - 1))
    def _final():
        out_ref[...] = jnp.maximum(
            final_scale * acc_ref[...] + res_ref[...].astype(jnp.float32), 0.0)


def _graph_edge_call(xdown, res, akron, wsub, gfeat, wedge, bcast, final_scale):
    N = xdown.shape[0]
    L, S, TV, _ = akron.shape
    Cout, inter = wsub.shape[2], wsub.shape[3]
    V = bcast.shape[0]
    K = gfeat.shape[2]
    kernel = functools.partial(_graph_edge_kernel, n_k=K, final_scale=final_scale)
    return pl.pallas_call(
        kernel,
        out_shape=jax.ShapeDtypeStruct((N, Cout, TV), jnp.float32),
        grid_spec=pltpu.PrefetchScalarGridSpec(
            num_scalar_prefetch=0,
            grid=(N, L, S),
            in_specs=[
                pl.BlockSpec((None, inter, TV), lambda n, l, s: (n, l, 0)),
                pl.BlockSpec((None, Cout, TV), lambda n, l, s: (n, 0, 0)),
                pl.BlockSpec((None, None, TV, TV), lambda n, l, s: (l, s, 0, 0)),
                pl.BlockSpec((None, None, Cout, inter), lambda n, l, s: (l, s, 0, 0)),
                pl.BlockSpec((None, None, K, 2 * inter, V),
                             lambda n, l, s: (n, l, 0, 0, 0)),
                pl.BlockSpec((None, inter, 2 * inter), lambda n, l, s: (l, 0, 0)),
                pl.BlockSpec((V, TV), lambda n, l, s: (0, 0)),
            ],
            out_specs=pl.BlockSpec((None, Cout, TV), lambda n, l, s: (n, 0, 0)),
            scratch_shapes=[pltpu.VMEM((Cout, TV), jnp.float32)],
        ),
        compiler_params=pltpu.CompilerParams(
            dimension_semantics=("parallel", "arbitrary", "arbitrary"),
            vmem_limit_bytes=VMEM_LIMIT),
    )(xdown, res, akron, wsub, gfeat, wedge, bcast)


# ---------------------------------------------------------------------------
# HD_Gconv forward
# ---------------------------------------------------------------------------
def hd_gconv_forward(x, params, k=5):
    N, Cin, T, V = x.shape
    A = params["PA"].astype(jnp.float32)                 # (L, S, V, V)
    L, S = A.shape[0], A.shape[1]
    Wd = params["W_down"]                                # (L, inter, Cin)
    Wsub = params["W_sub"]                               # (L, S, Cout, inter)
    We = params["W_edge"]                                # (L, inter, 2*inter)
    Wres = params["W_res"]                               # (Cout, Cin)
    inter = Wd.shape[1]
    Cout = Wres.shape[0]
    assert inter == Cout, "sum-combine interpretation requires inter == out_channels"
    TV = T * V

    bn_scale = 1.0 / math.sqrt(1.0 + BN_EPS)             # inference BN, gamma=1, beta=0
    final_scale = 1e-6 / math.sqrt(1.0 + BN_EPS)         # bn_init(self.bn, 1e-6)

    # ---- host-side prep: fold BN into weights, cast to bf16, build fixed operators
    w1 = (jnp.concatenate([Wd.reshape(L * inter, Cin), Wres], axis=0)
          * bn_scale).astype(jnp.bfloat16)                               # (L*inter+Cout, Cin)
    eye_v = jnp.eye(V, dtype=jnp.float32)
    mmat = (jnp.tile(eye_v, (T, 1)) / T).astype(jnp.bfloat16)            # (TV, V): mean over T
    bcast = jnp.tile(eye_v, (1, T)).astype(jnp.bfloat16)                 # (V, TV): repeat over T
    eye_t = jnp.eye(T, dtype=jnp.float32)
    akron = (jnp.einsum('tp,lsvu->lstupv', eye_t, A)
             .reshape(L, S, TV, TV).astype(jnp.bfloat16))                # I_T (x) A^T
    wsub = (Wsub * bn_scale).astype(jnp.bfloat16)
    wedge = (We * bn_scale).astype(jnp.bfloat16)

    x_flat = x.reshape(N, Cin, TV).astype(jnp.bfloat16)

    # ---- kernel 1: conv_down (all layers) + residual GEMM + EdgeConv T-mean ----
    xdown, res, xmean = _down_res_call(x_flat, w1, mmat, L, inter, Cout, TV, V)

    # ---- kNN graph feature (data-dependent): plain JAX ----
    # TODO(synk): top-k neighbour selection + gather have no clean Pallas equivalent.
    xm = xmean.reshape(N, L, inter, V)
    g = jnp.einsum('nlcv,nlcu->nlvu', xm, xm)
    sq = jnp.sum(xm * xm, axis=2)
    pd = 2.0 * g - sq[:, :, :, None] - sq[:, :, None, :]      # -||f_v - f_u||^2
    _, idx = jax.lax.top_k(pd, k)                             # (N, L, V, k)
    xm_vc = jnp.transpose(xm, (0, 1, 3, 2)).reshape(N * L, V, inter)
    idx_f = idx.reshape(N * L, V, k)
    b_idx = jnp.arange(N * L)[:, None, None]
    nbr = xm_vc[b_idx, idx_f]                                 # (N*L, V, k, C)
    ctr = jnp.broadcast_to(xm_vc[:, :, None, :], nbr.shape)
    gfeat = jnp.concatenate([nbr - ctr, ctr], axis=-1)        # (N*L, V, k, 2C)
    gfeat = jnp.transpose(gfeat.reshape(N, L, V, k, 2 * inter),
                          (0, 1, 3, 4, 2)).astype(jnp.bfloat16)   # (N, L, k, 2C, V)

    # ---- kernel 2: graph + edge + final (BN, residual add, ReLU), all fused ----
    out = _graph_edge_call(xdown, res, akron, wsub, gfeat, wedge, bcast, final_scale)
    return out.reshape(N, Cout, T, V)                          # back to NCHW


# ---------------------------------------------------------------------------
# Deterministic parameter construction (kaiming-like, synthetic)
# ---------------------------------------------------------------------------
def make_params(key, Cin, Cout, L, S, V):
    inter = Cout // (S - 9)                                    # as in HD_Gconv.__init__
    assert inter == Cout
    ks = jax.random.split(key, 5)

    def kaiming(k_, shape, fan_out):
        return jax.random.normal(k_, shape, jnp.float32) * math.sqrt(2.0 / fan_out)

    return {
        "PA": 0.3 * jax.random.normal(ks[0], (L, S, V, V), jnp.float32),
        "W_down": kaiming(ks[1], (L, inter, Cin), inter),
        "W_sub": kaiming(ks[2], (L, S, Cout, inter), Cout),
        "W_edge": kaiming(ks[3], (L, inter, 2 * inter), inter),
        "W_res": kaiming(ks[4], (Cout, Cin), Cout),
    }


if __name__ == "__main__":
    N, Cin, Cout, T, V = 2, 4, 8, 16, 16
    L, S, K_NN = 2, 10, 5                                      # A.shape = (L, S, V, V); EdgeConv k=5

    root = jax.random.PRNGKey(0)
    kx, kp = jax.random.split(root)
    params = make_params(kp, Cin, Cout, L, S, V)
    x = jax.random.normal(kx, (N, Cin, T, V), jnp.float32)

    fwd = jax.jit(functools.partial(hd_gconv_forward, k=K_NN))
    out = fwd(x, params)
    out = jax.block_until_ready(out)
    assert out.shape == (N, Cout, T, V), out.shape
    assert bool(jnp.all(jnp.isfinite(out)))
    print("KERNEL_OK")
</pallas_src>

<mosaic_0001>
module attributes {stable_mosaic.version = 11 : i64} {
  func.func @_down_res_kernel(%arg0: i32, %arg1: memref<1x4x256xbf16, #tpu.memory_space<vmem>>, %arg2: memref<24x4xbf16, #tpu.memory_space<vmem>>, %arg3: memref<256x16xbf16, #tpu.memory_space<vmem>>, %arg4: memref<1x16x256xbf16, #tpu.memory_space<vmem>>, %arg5: memref<1x8x256xbf16, #tpu.memory_space<vmem>>, %arg6: memref<1x16x16xf32, #tpu.memory_space<vmem>>) attributes {dimension_semantics = [#tpu.dimension_semantics<parallel>], iteration_bounds = array<i64: 2>, scalar_prefetch = 0 : i64, scratch_operands = 0 : i64, tpu.core_type = #tpu.core_type<tc>, window_params = [{transform_indices = @transform_0, window_bounds = array<i64: 1, 4, 256>}, {pipeline_mode = #tpu.pipeline_mode<synchronous>, transform_indices = @transform_1, window_bounds = array<i64: 24, 4>}, {pipeline_mode = #tpu.pipeline_mode<synchronous>, transform_indices = @transform_2, window_bounds = array<i64: 256, 16>}, {transform_indices = @transform_3, window_bounds = array<i64: 1, 16, 256>}, {transform_indices = @transform_4, window_bounds = array<i64: 1, 8, 256>}, {transform_indices = @transform_5, window_bounds = array<i64: 1, 16, 16>}]} {
    %c0 = arith.constant 0 : index
    %c0_0 = arith.constant 0 : index
    %0 = vector.load %arg2[%c0, %c0_0] : memref<24x4xbf16, #tpu.memory_space<vmem>>, vector<24x4xbf16>
    %c0_1 = arith.constant 0 : index
    %c0_2 = arith.constant 0 : index
    %c0_3 = arith.constant 0 : index
    %1 = vector.load %arg1[%c0_1, %c0_2, %c0_3] : memref<1x4x256xbf16, #tpu.memory_space<vmem>>, vector<1x4x256xbf16>
    %2 = vector.shape_cast %1 : vector<1x4x256xbf16> to vector<4x256xbf16>
    %cst = arith.constant dense<0.000000e+00> : vector<24x256xf32>
    %3 = tpu.matmul %0, %2, %cst {dimension_numbers = #tpu.dot_dimension_numbers<[1], [0], [0], [1], [0, 0, 1, 1], [], []>} : vector<24x4xbf16>, vector<4x256xbf16>, vector<24x256xf32> -> vector<24x256xf32>
    %4 = vector.extract_strided_slice %3 {offsets = [0, 0], sizes = [16, 256], strides = [1, 1]} : vector<24x256xf32> to vector<16x256xf32>
    %cst_4 = arith.constant 0.000000e+00 : f32
    %5 = vector.broadcast %cst_4 : f32 to vector<16x256xf32>
    %6 = arith.maximumf %4, %5 : vector<16x256xf32>
    %7 = arith.truncf %6 : vector<16x256xf32> to vector<16x256xbf16>
    %c0_5 = arith.constant 0 : index
    %c0_6 = arith.constant 0 : index
    %c0_7 = arith.constant 0 : index
    %8 = vector.load %arg4[%c0_5, %c0_6, %c0_7] : memref<1x16x256xbf16, #tpu.memory_space<vmem>>, vector<1x16x256xbf16>
    %9 = vector.shape_cast %8 : vector<1x16x256xbf16> to vector<16x256xbf16>
    %10 = vector.shape_cast %7 : vector<16x256xbf16> to vector<1x16x256xbf16>
    tpu.vector_store %arg4[%c0_5, %c0_6, %c0_7], %10 {strides = array<i32>} : memref<1x16x256xbf16, #tpu.memory_space<vmem>>, vector<1x16x256xbf16>,
    %11 = vector.extract_strided_slice %3 {offsets = [16, 0], sizes = [8, 256], strides = [1, 1]} : vector<24x256xf32> to vector<8x256xf32>
    %12 = arith.truncf %11 : vector<8x256xf32> to vector<8x256xbf16>
    %c0_8 = arith.constant 0 : index
    %c0_9 = arith.constant 0 : index
    %c0_10 = arith.constant 0 : index
    %13 = vector.load %arg5[%c0_8, %c0_9, %c0_10] : memref<1x8x256xbf16, #tpu.memory_space<vmem>>, vector<1x8x256xbf16>
    %14 = vector.shape_cast %13 : vector<1x8x256xbf16> to vector<8x256xbf16>
    %15 = vector.shape_cast %12 : vector<8x256xbf16> to vector<1x8x256xbf16>
    tpu.vector_store %arg5[%c0_8, %c0_9, %c0_10], %15 {strides = array<i32>} : memref<1x8x256xbf16, #tpu.memory_space<vmem>>, vector<1x8x256xbf16>,
    %c0_11 = arith.constant 0 : index
    %c0_12 = arith.constant 0 : index
    %16 = vector.load %arg3[%c0_11, %c0_12] : memref<256x16xbf16, #tpu.memory_space<vmem>>, vector<256x16xbf16>
    %cst_13 = arith.constant dense<0.000000e+00> : vector<16x16xf32>
    %17 = tpu.matmul %7, %16, %cst_13 {dimension_numbers = #tpu.dot_dimension_numbers<[1], [0], [0], [1], [0, 0, 1, 1], [], []>} : vector<16x256xbf16>, vector<256x16xbf16>, vector<16x16xf32> -> vector<16x16xf32>
    %c0_14 = arith.constant 0 : index
    %c0_15 = arith.constant 0 : index
    %c0_16 = arith.constant 0 : index
    %18 = vector.load %arg6[%c0_14, %c0_15, %c0_16] : memref<1x16x16xf32, #tpu.memory_space<vmem>>, vector<1x16x16xf32>
    %19 = vector.shape_cast %18 : vector<1x16x16xf32> to vector<16x16xf32>
    %20 = vector.shape_cast %17 : vector<16x16xf32> to vector<1x16x16xf32>
    tpu.vector_store %arg6[%c0_14, %c0_15, %c0_16], %20 {strides = array<i32>} : memref<1x16x16xf32, #tpu.memory_space<vmem>>, vector<1x16x16xf32>,
    return
  }
  func.func @transform_0(%arg0: i32) -> (i32, i32, i32) {
    %c0_i32 = arith.constant 0 : i32
    %c0_i32_0 = arith.constant 0 : i32
    %c0_i32_1 = arith.constant 0 : i32
    return %arg0, %c0_i32, %c0_i32_0 : i32, i32, i32
  }
  func.func @transform_1(%arg0: i32) -> (i32, i32) {
    %c0_i32 = arith.constant 0 : i32
    %c0_i32_0 = arith.constant 0 : i32
    %c0_i32_1 = arith.constant 0 : i32
    return %c0_i32, %c0_i32_0 : i32, i32
  }
  func.func @transform_2(%arg0: i32) -> (i32, i32) {
    %c0_i32 = arith.constant 0 : i32
    %c0_i32_0 = arith.constant 0 : i32
    %c0_i32_1 = arith.constant 0 : i32
    return %c0_i32, %c0_i32_0 : i32, i32
  }
  func.func @transform_3(%arg0: i32) -> (i32, i32, i32) {
    %c0_i32 = arith.constant 0 : i32
    %c0_i32_0 = arith.constant 0 : i32
    %c0_i32_1 = arith.constant 0 : i32
    return %arg0, %c0_i32, %c0_i32_0 : i32, i32, i32
  }
  func.func @transform_4(%arg0: i32) -> (i32, i32, i32) {
    %c0_i32 = arith.constant 0 : i32
    %c0_i32_0 = arith.constant 0 : i32
    %c0_i32_1 = arith.constant 0 : i32
    return %arg0, %c0_i32, %c0_i32_0 : i32, i32, i32
  }
  func.func @transform_5(%arg0: i32) -> (i32, i32, i32) {
    %c0_i32 = arith.constant 0 : i32
    %c0_i32_0 = arith.constant 0 : i32
    %c0_i32_1 = arith.constant 0 : i32
    return %arg0, %c0_i32, %c0_i32_0 : i32, i32, i32
  }
}

module attributes {stable_mosaic.version = 11 : i64} {
  func.func @_graph_edge_kernel(%arg0: i32, %arg1: i32, %arg2: i32, %arg3: memref<1x8x256xbf16, #tpu.memory_space<vmem>>, %arg4: memref<1x8x256xbf16, #tpu.memory_space<vmem>>, %arg5: memref<1x1x256x256xbf16, #tpu.memory_space<vmem>>, %arg6: memref<1x1x8x8xbf16, #tpu.memory_space<vmem>>, %arg7: memref<1x1x5x16x16xbf16, #tpu.memory_space<vmem>>, %arg8: memref<1x8x16xbf16, #tpu.memory_space<vmem>>, %arg9: memref<16x256xbf16, #tpu.memory_space<vmem>>, %arg10: memref<1x8x256xf32, #tpu.memory_space<vmem>>, %arg11: memref<8x256xf32, #tpu.memory_space<vmem>>) attributes {dimension_semantics = [#tpu.dimension_semantics<parallel>, #tpu.dimension_semantics<arbitrary>, #tpu.dimension_semantics<arbitrary>], iteration_bounds = array<i64: 2, 2, 10>, scalar_prefetch = 0 : i64, scratch_operands = 1 : i64, tpu.core_type = #tpu.core_type<tc>, window_params = [{transform_indices = @transform_0, window_bounds = array<i64: 1, 8, 256>}, {transform_indices = @transform_1, window_bounds = array<i64: 1, 8, 256>}, {transform_indices = @transform_2, window_bounds = array<i64: 1, 1, 256, 256>}, {transform_indices = @transform_3, window_bounds = array<i64: 1, 1, 8, 8>}, {transform_indices = @transform_4, window_bounds = array<i64: 1, 1, 5, 16, 16>}, {transform_indices = @transform_5, window_bounds = array<i64: 1, 8, 16>}, {pipeline_mode = #tpu.pipeline_mode<synchronous>, transform_indices = @transform_6, window_bounds = array<i64: 16, 256>}, {transform_indices = @transform_7, window_bounds = array<i64: 1, 8, 256>}]} {
    %c0_i32 = arith.constant 0 : i32
    %0 = arith.cmpi eq, %arg1, %c0_i32 : i32
    %c0_i32_0 = arith.constant 0 : i32
    %1 = arith.cmpi eq, %arg2, %c0_i32_0 : i32
    %2 = arith.andi %0, %1 : i1
    %3 = arith.extui %2 : i1 to i32
    %c0_i32_1 = arith.constant 0 : i32
    %4 = arith.cmpi ne, %3, %c0_i32_1 : i32
    scf.if %4 {
      %cst_20 = arith.constant 0.000000e+00 : f32
      %25 = vector.broadcast %cst_20 : f32 to vector<8x256xf32>
      %c0_21 = arith.constant 0 : index
      %c0_22 = arith.constant 0 : index
      %26 = vector.load %arg11[%c0_21, %c0_22] : memref<8x256xf32, #tpu.memory_space<vmem>>, vector<8x256xf32>
      tpu.vector_store %arg11[%c0_21, %c0_22], %25 {strides = array<i32>} : memref<8x256xf32, #tpu.memory_space<vmem>>, vector<8x256xf32>,
    } else {
    }
    %c0_i32_2 = arith.constant 0 : i32
    %5 = arith.cmpi eq, %arg2, %c0_i32_2 : i32
    %6 = arith.extui %5 : i1 to i32
    %c0_i32_3 = arith.constant 0 : i32
    %7 = arith.cmpi ne, %6, %c0_i32_3 : i32
    scf.if %7 {
      %c0_20 = arith.constant 0 : index
      %c0_21 = arith.constant 0 : index
      %c0_22 = arith.constant 0 : index
      %c0_23 = arith.constant 0 : index
      %c0_24 = arith.constant 0 : index
      %25 = vector.load %arg7[%c0_20, %c0_21, %c0_22, %c0_23, %c0_24] : memref<1x1x5x16x16xbf16, #tpu.memory_space<vmem>>, vector<1x1x5x16x16xbf16>
      %26 = vector.shape_cast %25 : vector<1x1x5x16x16xbf16> to vector<5x16x16xbf16>
      %c0_25 = arith.constant 0 : index
      %c0_26 = arith.constant 0 : index
      %c0_27 = arith.constant 0 : index
      %27 = vector.load %arg8[%c0_25, %c0_26, %c0_27] : memref<1x8x16xbf16, #tpu.memory_space<vmem>>, vector<1x8x16xbf16>
      %28 = vector.shape_cast %27 : vector<1x8x16xbf16> to vector<8x16xbf16>
      %29 = vector.extract_strided_slice %26 {offsets = [0, 0, 0], sizes = [1, 16, 16], strides = [1, 1, 1]} : vector<5x16x16xbf16> to vector<1x16x16xbf16>
      %30 = vector.shape_cast %29 : vector<1x16x16xbf16> to vector<16x16xbf16>
      %cst_28 = arith.constant dense<0.000000e+00> : vector<8x16xf32>
      %31 = tpu.matmul %28, %30, %cst_28 {dimension_numbers = #tpu.dot_dimension_numbers<[1], [0], [0], [1], [0, 0, 1, 1], [], []>} : vector<8x16xbf16>, vector<16x16xbf16>, vector<8x16xf32> -> vector<8x16xf32>
      %cst_29 = arith.constant 0.000000e+00 : f32
      %32 = vector.broadcast %cst_29 : f32 to vector<8x16xf32>
      %33 = arith.cmpf oge, %31, %32 : vector<8x16xf32>
      %cst_30 = arith.constant 2.000000e-01 : f32
      %34 = vector.broadcast %cst_30 : f32 to vector<8x16xf32>
      %35 = arith.mulf %34, %31 : vector<8x16xf32>
      %36 = arith.select %33, %31, %35 : vector<8x16xi1>, vector<8x16xf32>
      %37 = vector.extract_strided_slice %26 {offsets = [1, 0, 0], sizes = [1, 16, 16], strides = [1, 1, 1]} : vector<5x16x16xbf16> to vector<1x16x16xbf16>
      %38 = vector.shape_cast %37 : vector<1x16x16xbf16> to vector<16x16xbf16>
      %cst_31 = arith.constant dense<0.000000e+00> : vector<8x16xf32>
      %39 = tpu.matmul %28, %38, %cst_31 {dimension_numbers = #tpu.dot_dimension_numbers<[1], [0], [0], [1], [0, 0, 1, 1], [], []>} : vector<8x16xbf16>, vector<16x16xbf16>, vector<8x16xf32> -> vector<8x16xf32>
      %cst_32 = arith.constant 0.000000e+00 : f32
      %40 = vector.broadcast %cst_32 : f32 to vector<8x16xf32>
      %41 = arith.cmpf oge, %39, %40 : vector<8x16xf32>
      %cst_33 = arith.constant 2.000000e-01 : f32
      %42 = vector.broadcast %cst_33 : f32 to vector<8x16xf32>
      %43 = arith.mulf %42, %39 : vector<8x16xf32>
      %44 = arith.select %41, %39, %43 : vector<8x16xi1>, vector<8x16xf32>
      %45 = arith.maximumf %36, %44 : vector<8x16xf32>
      %46 = vector.extract_strided_slice %26 {offsets = [2, 0, 0], sizes = [1, 16, 16], strides = [1, 1, 1]} : vector<5x16x16xbf16> to vector<1x16x16xbf16>
      %47 = vector.shape_cast %46 : vector<1x16x16xbf16> to vector<16x16xbf16>
      %cst_34 = arith.constant dense<0.000000e+00> : vector<8x16xf32>
      %48 = tpu.matmul %28, %47, %cst_34 {dimension_numbers = #tpu.dot_dimension_numbers<[1], [0], [0], [1], [0, 0, 1, 1], [], []>} : vector<8x16xbf16>, vector<16x16xbf16>, vector<8x16xf32> -> vector<8x16xf32>
      %cst_35 = arith.constant 0.000000e+00 : f32
      %49 = vector.broadcast %cst_35 : f32 to vector<8x16xf32>
      %50 = arith.cmpf oge, %48, %49 : vector<8x16xf32>
      %cst_36 = arith.constant 2.000000e-01 : f32
      %51 = vector.broadcast %cst_36 : f32 to vector<8x16xf32>
      %52 = arith.mulf %51, %48 : vector<8x16xf32>
      %53 = arith.select %50, %48, %52 : vector<8x16xi1>, vector<8x16xf32>
      %54 = arith.maximumf %45, %53 : vector<8x16xf32>
      %55 = vector.extract_strided_slice %26 {offsets = [3, 0, 0], sizes = [1, 16, 16], strides = [1, 1, 1]} : vector<5x16x16xbf16> to vector<1x16x16xbf16>
      %56 = vector.shape_cast %55 : vector<1x16x16xbf16> to vector<16x16xbf16>
      %cst_37 = arith.constant dense<0.000000e+00> : vector<8x16xf32>
      %57 = tpu.matmul %28, %56, %cst_37 {dimension_numbers = #tpu.dot_dimension_numbers<[1], [0], [0], [1], [0, 0, 1, 1], [], []>} : vector<8x16xbf16>, vector<16x16xbf16>, vector<8x16xf32> -> vector<8x16xf32>
      %cst_38 = arith.constant 0.000000e+00 : f32
      %58 = vector.broadcast %cst_38 : f32 to vector<8x16xf32>
      %59 = arith.cmpf oge, %57, %58 : vector<8x16xf32>
      %cst_39 = arith.constant 2.000000e-01 : f32
      %60 = vector.broadcast %cst_39 : f32 to vector<8x16xf32>
      %61 = arith.mulf %60, %57 : vector<8x16xf32>
      %62 = arith.select %59, %57, %61 : vector<8x16xi1>, vector<8x16xf32>
      %63 = arith.maximumf %54, %62 : vector<8x16xf32>
      %64 = vector.extract_strided_slice %26 {offsets = [4, 0, 0], sizes = [1, 16, 16], strides = [1, 1, 1]} : vector<5x16x16xbf16> to vector<1x16x16xbf16>
      %65 = vector.shape_cast %64 : vector<1x16x16xbf16> to vector<16x16xbf16>
      %cst_40 = arith.constant dense<0.000000e+00> : vector<8x16xf32>
      %66 = tpu.matmul %28, %65, %cst_40 {dimension_numbers = #tpu.dot_dimension_numbers<[1], [0], [0], [1], [0, 0, 1, 1], [], []>} : vector<8x16xbf16>, vector<16x16xbf16>, vector<8x16xf32> -> vector<8x16xf32>
      %cst_41 = arith.constant 0.000000e+00 : f32
      %67 = vector.broadcast %cst_41 : f32 to vector<8x16xf32>
      %68 = arith.cmpf oge, %66, %67 : vector<8x16xf32>
      %cst_42 = arith.constant 2.000000e-01 : f32
      %69 = vector.broadcast %cst_42 : f32 to vector<8x16xf32>
      %70 = arith.mulf %69, %66 : vector<8x16xf32>
      %71 = arith.select %68, %66, %70 : vector<8x16xi1>, vector<8x16xf32>
      %72 = arith.maximumf %63, %71 : vector<8x16xf32>
      %c0_43 = arith.constant 0 : index
      %c0_44 = arith.constant 0 : index
      %73 = vector.load %arg11[%c0_43, %c0_44] : memref<8x256xf32, #tpu.memory_space<vmem>>, vector<8x256xf32>
      %74 = arith.truncf %72 : vector<8x16xf32> to vector<8x16xbf16>
      %c0_45 = arith.constant 0 : index
      %c0_46 = arith.constant 0 : index
      %75 = vector.load %arg9[%c0_45, %c0_46] : memref<16x256xbf16, #tpu.memory_space<vmem>>, vector<16x256xbf16>
      %cst_47 = arith.constant dense<0.000000e+00> : vector<8x256xf32>
      %76 = tpu.matmul %74, %75, %cst_47 {dimension_numbers = #tpu.dot_dimension_numbers<[1], [0], [0], [1], [0, 0, 1, 1], [], []>} : vector<8x16xbf16>, vector<16x256xbf16>, vector<8x256xf32> -> vector<8x256xf32>
      %77 = arith.addf %73, %76 : vector<8x256xf32>
      %c0_48 = arith.constant 0 : index
      %c0_49 = arith.constant 0 : index
      %78 = vector.load %arg11[%c0_48, %c0_49] : memref<8x256xf32, #tpu.memory_space<vmem>>, vector<8x256xf32>
      tpu.vector_store %arg11[%c0_48, %c0_49], %77 {strides = array<i32>} : memref<8x256xf32, #tpu.memory_space<vmem>>, vector<8x256xf32>,
    } else {
    }
    %c0 = arith.constant 0 : index
    %c0_4 = arith.constant 0 : index
    %c0_5 = arith.constant 0 : index
    %8 = vector.load %arg3[%c0, %c0_4, %c0_5] : memref<1x8x256xbf16, #tpu.memory_space<vmem>>, vector<1x8x256xbf16>
    %9 = vector.shape_cast %8 : vector<1x8x256xbf16> to vector<8x256xbf16>
    %c0_6 = arith.constant 0 : index
    %c0_7 = arith.constant 0 : index
    %c0_8 = arith.constant 0 : index
    %c0_9 = arith.constant 0 : index
    %10 = vector.load %arg5[%c0_6, %c0_7, %c0_8, %c0_9] : memref<1x1x256x256xbf16, #tpu.memory_space<vmem>>, vector<1x1x256x256xbf16>
    %11 = vector.shape_cast %10 : vector<1x1x256x256xbf16> to vector<256x256xbf16>
    %cst = arith.constant dense<0.000000e+00> : vector<8x256xf32>
    %12 = tpu.matmul %9, %11, %cst {dimension_numbers = #tpu.dot_dimension_numbers<[1], [0], [0], [1], [0, 0, 1, 1], [], []>} : vector<8x256xbf16>, vector<256x256xbf16>, vector<8x256xf32> -> vector<8x256xf32>
    %c0_10 = arith.constant 0 : index
    %c0_11 = arith.constant 0 : index
    %13 = vector.load %arg11[%c0_10, %c0_11] : memref<8x256xf32, #tpu.memory_space<vmem>>, vector<8x256xf32>
    %c0_12 = arith.constant 0 : index
    %c0_13 = arith.constant 0 : index
    %c0_14 = arith.constant 0 : index
    %c0_15 = arith.constant 0 : index
    %14 = vector.load %arg6[%c0_12, %c0_13, %c0_14, %c0_15] : memref<1x1x8x8xbf16, #tpu.memory_space<vmem>>, vector<1x1x8x8xbf16>
    %15 = vector.shape_cast %14 : vector<1x1x8x8xbf16> to vector<8x8xbf16>
    %16 = arith.truncf %12 : vector<8x256xf32> to vector<8x256xbf16>
    %cst_16 = arith.constant dense<0.000000e+00> : vector<8x256xf32>
    %17 = tpu.matmul %15, %16, %cst_16 {dimension_numbers = #tpu.dot_dimension_numbers<[1], [0], [0], [1], [0, 0, 1, 1], [], []>} : vector<8x8xbf16>, vector<8x256xbf16>, vector<8x256xf32> -> vector<8x256xf32>
    %18 = arith.addf %13, %17 : vector<8x256xf32>
    %c0_17 = arith.constant 0 : index
    %c0_18 = arith.constant 0 : index
    %19 = vector.load %arg11[%c0_17, %c0_18] : memref<8x256xf32, #tpu.memory_space<vmem>>, vector<8x256xf32>
    tpu.vector_store %arg11[%c0_17, %c0_18], %18 {strides = array<i32>} : memref<8x256xf32, #tpu.memory_space<vmem>>, vector<8x256xf32>,
    %c1_i32 = arith.constant 1 : i32
    %20 = arith.cmpi eq, %arg1, %c1_i32 : i32
    %c9_i32 = arith.constant 9 : i32
    %21 = arith.cmpi eq, %arg2, %c9_i32 : i32
    %22 = arith.andi %20, %21 : i1
    %23 = arith.extui %22 : i1 to i32
    %c0_i32_19 = arith.constant 0 : i32
    %24 = arith.cmpi ne, %23, %c0_i32_19 : i32
    scf.if %24 {
      %c0_20 = arith.constant 0 : index
      %c0_21 = arith.constant 0 : index
      %25 = vector.load %arg11[%c0_20, %c0_21] : memref<8x256xf32, #tpu.memory_space<vmem>>, vector<8x256xf32>
      %cst_22 = arith.constant 9.99994995E-7 : f32
      %26 = vector.broadcast %cst_22 : f32 to vector<8x256xf32>
      %27 = arith.mulf %26, %25 : vector<8x256xf32>
      %c0_23 = arith.constant 0 : index
      %c0_24 = arith.constant 0 : index
      %c0_25 = arith.constant 0 : index
      %28 = vector.load %arg4[%c0_23, %c0_24, %c0_25] : memref<1x8x256xbf16, #tpu.memory_space<vmem>>, vector<1x8x256xbf16>
      %29 = vector.shape_cast %28 : vector<1x8x256xbf16> to vector<8x256xbf16>
      %30 = arith.extf %29 : vector<8x256xbf16> to vector<8x256xf32>
      %31 = arith.addf %27, %30 : vector<8x256xf32>
      %cst_26 = arith.constant 0.000000e+00 : f32
      %32 = vector.broadcast %cst_26 : f32 to vector<8x256xf32>
      %33 = arith.maximumf %31, %32 : vector<8x256xf32>
      %c0_27 = arith.constant 0 : index
      %c0_28 = arith.constant 0 : index
      %c0_29 = arith.constant 0 : index
      %34 = vector.load %arg10[%c0_27, %c0_28, %c0_29] : memref<1x8x256xf32, #tpu.memory_space<vmem>>, vector<1x8x256xf32>
      %35 = vector.shape_cast %34 : vector<1x8x256xf32> to vector<8x256xf32>
      %36 = vector.shape_cast %33 : vector<8x256xf32> to vector<1x8x256xf32>
      tpu.vector_store %arg10[%c0_27, %c0_28, %c0_29], %36 {strides = array<i32>} : memref<1x8x256xf32, #tpu.memory_space<vmem>>, vector<1x8x256xf32>,
    } else {
    }
    return
  }
  func.func @transform_0(%arg0: i32, %arg1: i32, %arg2: i32) -> (i32, i32, i32) {
    %c0_i32 = arith.constant 0 : i32
    %c0_i32_0 = arith.constant 0 : i32
    return %arg0, %arg1, %c0_i32 : i32, i32, i32
  }
  func.func @transform_1(%arg0: i32, %arg1: i32, %arg2: i32) -> (i32, i32, i32) {
    %c0_i32 = arith.constant 0 : i32
    %c0_i32_0 = arith.constant 0 : i32
    %c0_i32_1 = arith.constant 0 : i32
    return %arg0, %c0_i32, %c0_i32_0 : i32, i32, i32
  }
  func.func @transform_2(%arg0: i32, %arg1: i32, %arg2: i32) -> (i32, i32, i32, i32) {
    %c0_i32 = arith.constant 0 : i32
    %c0_i32_0 = arith.constant 0 : i32
    %c0_i32_1 = arith.constant 0 : i32
    return %arg1, %arg2, %c0_i32, %c0_i32_0 : i32, i32, i32, i32
  }
  func.func @transform_3(%arg0: i32, %arg1: i32, %arg2: i32) -> (i32, i32, i32, i32) {
    %c0_i32 = arith.constant 0 : i32
    %c0_i32_0 = arith.constant 0 : i32
    %c0_i32_1 = arith.constant 0 : i32
    return %arg1, %arg2, %c0_i32, %c0_i32_0 : i32, i32, i32, i32
  }
  func.func @transform_4(%arg0: i32, %arg1: i32, %arg2: i32) -> (i32, i32, i32, i32, i32) {
    %c0_i32 = arith.constant 0 : i32
    %c0_i32_0 = arith.constant 0 : i32
    %c0_i32_1 = arith.constant 0 : i32
    %c0_i32_2 = arith.constant 0 : i32
    return %arg0, %arg1, %c0_i32, %c0_i32_0, %c0_i32_1 : i32, i32, i32, i32, i32
  }
  func.func @transform_5(%arg0: i32, %arg1: i32, %arg2: i32) -> (i32, i32, i32) {
    %c0_i32 = arith.constant 0 : i32
    %c0_i32_0 = arith.constant 0 : i32
    %c0_i32_1 = arith.constant 0 : i32
    return %arg1, %c0_i32, %c0_i32_0 : i32, i32, i32
  }
  func.func @transform_6(%arg0: i32, %arg1: i32, %arg2: i32) -> (i32, i32) {
    %c0_i32 = arith.constant 0 : i32
    %c0_i32_0 = arith.constant 0 : i32
    %c0_i32_1 = arith.constant 0 : i32
    return %c0_i32, %c0_i32_0 : i32, i32
  }
  func.func @transform_7(%arg0: i32, %arg1: i32, %arg2: i32) -> (i32, i32, i32) {
    %c0_i32 = arith.constant 0 : i32
    %c0_i32_0 = arith.constant 0 : i32
    %c0_i32_1 = arith.constant 0 : i32
    return %arg0, %c0_i32, %c0_i32_0 : i32, i32, i32
  }
}

</mosaic_0001>

<llo_original>
// kernel: hd_gconv_forward.2
$region0: #{hd_gconv_forward.2}
  #allocation0 [shape = 'u32[]', space=smem, size = 0x4, offset = 0x4, fixed_abs, tag = 'smem constant byte address 0x4 - core index']
  #allocation1 [shape = 'u32[72,128]{1,0:T(1,128)}', space=vmem, size = 0x9000, scoped, tag = 'internal scratch']
  %s0 = inlined_call_operand.vmem [shape: bf16[2,4,256], index: 0, kind: input, shape index: {}]
  %s1 = inlined_call_operand.vmem [shape: bf16[24,4], index: 1, kind: input, shape index: {}]
  %s2 = inlined_call_operand.vmem [shape: bf16[256,16], index: 2, kind: input, shape index: {}]
  %s3 = inlined_call_operand.vmem [shape: bf16[2,16,256], index: 3, kind: output, shape index: {0}]
  %s4 = inlined_call_operand.vmem [shape: bf16[2,8,256], index: 4, kind: output, shape index: {1}]
  %s5 = inlined_call_operand.vmem [shape: f32[2,16,16], index: 5, kind: output, shape index: {2}]
  %6 = xla_tuple %s3, %s4, %s5
  %s7 = sld [smem:[#allocation0]]
  $region61: #{hd_gconv_forward.2} parent=0
    _
  %s9 = ssub.s32 1, %s7
  %s10 = scalar_select 0, %s9, %s7
  loop: start=0, step=1, limit=4
  $region2: #{hd_gconv_forward.2} parent=0 // loop_pre_header
    _
  $region3: #{hd_gconv_forward.2} parent=0 // loop_header
    %s12 = sphi 0, %s16
    %p13 = scmp.ge.s32.totalorder %s12, 4
    %s22 = sphi 0, %s24
    %s25 = sphi 0, %s22
    %s26 = sphi 0, %s25
    %s42 = sphi 0, %s26
    %s46 = sphi 0, %s46
    %s48 = sphi 0, %s46
    %s49 = sphi 0, %s48
    %s63 = sphi 0, %s49
    %s67 = sphi 0, %s67
    %s69 = sphi 0, %s67
    %s70 = sphi 0, %s69
    %s84 = sphi 0, %s70
    %s90 = sphi 0, %s92
    %s93 = sphi 0, %s90
    %s94 = sphi 0, %s93
    %s110 = sphi 0, %s94
    %s116 = sphi 0, %s118
    %s119 = sphi 0, %s116
    %s120 = sphi 0, %s119
    %s136 = sphi 0, %s120
    %s142 = sphi 0, %s144
    %s145 = sphi 0, %s142
    %s146 = sphi 0, %s145
    %s162 = sphi 0, %s146
  $region4: #{hd_gconv_forward.2} parent=0 // loop_header_branch
    %15 = sbr.rel (%p13) target = $region8
  $region5: #{hd_gconv_forward.2} parent=0 // loop_body
    %s17 = ssub.s32 %s12, 1
    %s18 = ssub.s32 %s12, 2
    %s19 = sadd.s32 %s12, 1
    %s20 = ssub.s32 %s12, %s19
    %p21 = scmp.eq.s32.totalorder %s20, 0
    %s23 = sadd.s32 %s22, 1
    %s24 = scalar_select %p21, %s22, %s23
    %p27 = pneg %p21
    %p28 = scmp.eq.s32.totalorder %s12, 1
    %p29 = por %p27, %p28
    %p30 = scmp.ne.s32.totalorder %s22, %s25
    %p31 = scmp.eq.s32.totalorder %s12, 0
    %p32 = por %p30, %p31
    %p33 = scmp.ne.s32.totalorder %s22, %s25
    %p34 = scmp.eq.s32.totalorder %s17, 1
    %p35 = por %p33, %p34
    %p36 = scmp.ne.s32.totalorder %s25, %s26
    %p37 = scmp.eq.s32.totalorder %s17, 0
    %p38 = por %p36, %p37
    %p39 = scmp.ne.s32.totalorder %s25, %s26
    %p40 = scmp.eq.s32.totalorder %s18, 1
    %p41 = por %p39, %p40
    %p43 = scmp.ne.s32.totalorder %s26, %s42
    %p44 = scmp.eq.s32.totalorder %s18, 0
    %p45 = por %p43, %p44
    %s47 = sadd.s32 %s46, 1
    %p50 = scmp.eq.s32.totalorder %s12, 1
    %p51 = scmp.ne.s32.totalorder %s46, %s48
    %p52 = scmp.eq.s32.totalorder %s12, 0
    %p53 = por %p51, %p52
    %p54 = scmp.ne.s32.totalorder %s46, %s48
    %p55 = scmp.eq.s32.totalorder %s17, 1
    %p56 = por %p54, %p55
    %p57 = scmp.ne.s32.totalorder %s48, %s49
    %p58 = scmp.eq.s32.totalorder %s17, 0
    %p59 = por %p57, %p58
    %p60 = scmp.ne.s32.totalorder %s48, %s49
    %p61 = scmp.eq.s32.totalorder %s18, 1
    %p62 = por %p60, %p61
    %p64 = scmp.ne.s32.totalorder %s49, %s63
    %p65 = scmp.eq.s32.totalorder %s18, 0
    %p66 = por %p64, %p65
    %s68 = sadd.s32 %s67, 1
    %p71 = scmp.eq.s32.totalorder %s12, 1
    %p72 = scmp.ne.s32.totalorder %s67, %s69
    %p73 = scmp.eq.s32.totalorder %s12, 0
    %p74 = por %p72, %p73
    %p75 = scmp.ne.s32.totalorder %s67, %s69
    %p76 = scmp.eq.s32.totalorder %s17, 1
    %p77 = por %p75, %p76
    %p78 = scmp.ne.s32.totalorder %s69, %s70
    %p79 = scmp.eq.s32.totalorder %s17, 0
    %p80 = por %p78, %p79
    %p81 = scmp.ne.s32.totalorder %s69, %s70
    %p82 = scmp.eq.s32.totalorder %s18, 1
    %p83 = por %p81, %p82
    %p85 = scmp.ne.s32.totalorder %s70, %s84
    %p86 = scmp.eq.s32.totalorder %s18, 0
    %p87 = por %p85, %p86
    %s88 = ssub.s32 %s12, %s19
    %p89 = scmp.eq.s32.totalorder %s88, 0
    %s91 = sadd.s32 %s90, 1
    %s92 = scalar_select %p89, %s90, %s91
    %p95 = pneg %p89
    %p96 = scmp.eq.s32.totalorder %s12, 1
    %p97 = por %p95, %p96
    %p98 = scmp.ne.s32.totalorder %s90, %s93
    %p99 = scmp.eq.s32.totalorder %s12, 0
    %p100 = por %p98, %p99
    %p101 = scmp.ne.s32.totalorder %s90, %s93
    %p102 = scmp.eq.s32.totalorder %s17, 1
    %p103 = por %p101, %p102
    %p104 = scmp.ne.s32.totalorder %s93, %s94
    %p105 = scmp.eq.s32.totalorder %s17, 0
    %p106 = por %p104, %p105
    %p107 = scmp.ne.s32.totalorder %s93, %s94
    %p108 = scmp.eq.s32.totalorder %s18, 1
    %p109 = por %p107, %p108
    %p111 = scmp.ne.s32.totalorder %s94, %s110
    %p112 = scmp.eq.s32.totalorder %s18, 0
    %p113 = por %p111, %p112
    %s114 = ssub.s32 %s12, %s19
    %p115 = scmp.eq.s32.totalorder %s114, 0
    %s117 = sadd.s32 %s116, 1
    %s118 = scalar_select %p115, %s116, %s117
    %p121 = pneg %p115
    %p122 = scmp.eq.s32.totalorder %s12, 1
    %p123 = por %p121, %p122
    %p124 = scmp.ne.s32.totalorder %s116, %s119
    %p125 = scmp.eq.s32.totalorder %s12, 0
    %p126 = por %p124, %p125
    %p127 = scmp.ne.s32.totalorder %s116, %s119
    %p128 = scmp.eq.s32.totalorder %s17, 1
    %p129 = por %p127, %p128
    %p130 = scmp.ne.s32.totalorder %s119, %s120
    %p131 = scmp.eq.s32.totalorder %s17, 0
    %p132 = por %p130, %p131
    %p133 = scmp.ne.s32.totalorder %s119, %s120
    %p134 = scmp.eq.s32.totalorder %s18, 1
    %p135 = por %p133, %p134
    %p137 = scmp.ne.s32.totalorder %s120, %s136
    %p138 = scmp.eq.s32.totalorder %s18, 0
    %p139 = por %p137, %p138
    %s140 = ssub.s32 %s12, %s19
    %p141 = scmp.eq.s32.totalorder %s140, 0
    %s143 = sadd.s32 %s142, 1
    %s144 = scalar_select %p141, %s142, %s143
    %p147 = pneg %p141
    %p148 = scmp.eq.s32.totalorder %s12, 1
    %p149 = por %p147, %p148
    %p150 = scmp.ne.s32.totalorder %s142, %s145
    %p151 = scmp.eq.s32.totalorder %s12, 0
    %p152 = por %p150, %p151
    %p153 = scmp.ne.s32.totalorder %s142, %s145
    %p154 = scmp.eq.s32.totalorder %s17, 1
    %p155 = por %p153, %p154
    %p156 = scmp.ne.s32.totalorder %s145, %s146
    %p157 = scmp.eq.s32.totalorder %s17, 0
    %p158 = por %p156, %p157
    %p159 = scmp.ne.s32.totalorder %s145, %s146
    %p160 = scmp.eq.s32.totalorder %s18, 1
    %p161 = por %p159, %p160
    %p163 = scmp.ne.s32.totalorder %s146, %s162
    %p164 = scmp.eq.s32.totalorder %s18, 0
    %p165 = por %p163, %p164
    %p166 = scmp.le.s32.totalorder 1, %s12
    %p167 = scmp.lt.s32.totalorder %s12, 3
    %p168 = pnand %p166, %p167
    %p169 = pneg %p168
    // Predicated region
    $region9: #{hd_gconv_forward.2} parent=5 // pred_check
      _
    $region10: #{hd_gconv_forward.2} parent=5 // pred_check_branch
      %171 = sbr.rel (%p168) target = $region12
    $region11: #{hd_gconv_forward.2} parent=5 // pred_region
      %s172 = ssub.s32 %s12, 1
      // Predicated region
      $region13: #{hd_gconv_forward.2} parent=11 // pred_check
        %p173 = pneg %p59
      $region14: #{hd_gconv_forward.2} parent=11 // pred_check_branch
        %175 = sbr.rel (%p173) target = $region16
      $region15: #{hd_gconv_forward.2} parent=11 // pred_region
        _
      $region16: #{hd_gconv_forward.2} parent=11 // pred_fallthru
        _
      // Predicated region
      $region17: #{hd_gconv_forward.2} parent=11 // pred_check
        %p176 = pneg %p80
      $region18: #{hd_gconv_forward.2} parent=11 // pred_check_branch
        %178 = sbr.rel (%p176) target = $region20
      $region19: #{hd_gconv_forward.2} parent=11 // pred_region
        _
      $region20: #{hd_gconv_forward.2} parent=11 // pred_fallthru
        _
    $region12: #{hd_gconv_forward.2} parent=5 // pred_fallthru
      _
    %p179 = scmp.lt.s32.totalorder %s12, 2
    // Predicated region
    $region21: #{hd_gconv_forward.2} parent=5 // pred_check
      %p180 = pneg %p179
    $region22: #{hd_gconv_forward.2} parent=5 // pred_check_branch
      %182 = sbr.rel (%p180) target = $region24
    $region23: #{hd_gconv_forward.2} parent=5 // pred_region
      // Predicated region
      $region25: #{hd_gconv_forward.2} parent=23 // pred_check
        %p183 = pneg %p32
      $region26: #{hd_gconv_forward.2} parent=23 // pred_check_branch
        %185 = sbr.rel (%p183) target = $region28
      $region27: #{hd_gconv_forward.2} parent=23 // pred_region
        %p186 = scmp.lt.s32.totalorder %s12, 1
        %s187 = scalar_select %p186, %s12, 1
        %s188 = smul.addr %s187, 2
        %s189 = smul.addr %s188, 2
        %s190 = scalar_lea.vmem %s0, %s189
      $region28: #{hd_gconv_forward.2} parent=23 // pred_fallthru
        _
    $region24: #{hd_gconv_forward.2} parent=5 // pred_fallthru
      _
    %p191 = scmp.le.s32.totalorder 1, %s12
    %p192 = scmp.lt.s32.totalorder %s12, 3
    %p193 = pnand %p191, %p192
    %p194 = pneg %p193
    // Predicated region
    $region29: #{hd_gconv_forward.2} parent=5 // pred_check
      _
    $region30: #{hd_gconv_forward.2} parent=5 // pred_check_branch
      %196 = sbr.rel (%p193) target = $region32
    $region31: #{hd_gconv_forward.2} parent=5 // pred_region
      %s197 = ssub.s32 %s12, 1
      %p198 = scmp.lt.s32.totalorder %s17, 1
      %s199 = scalar_select %p198, %s17, 1
      %s200 = smul.addr %s199, 2
      %s201 = smul.addr %s200, 2
      %s202 = scalar_lea.vmem %s0, %s201
      %p203 = pneg %p38
      %p204 = pneg %p35
      %p205 = pneg %p59
      %p206 = pneg %p56
      %p207 = pneg %p80
      %p208 = pneg %p77
      %p209 = pneg %p106
      %p210 = pneg %p103
      %p211 = scmp.lt.s32.totalorder %s17, 1
      %s212 = scalar_select %p211, %s17, 1
      %s213 = smul.addr %s212, 4
      %s214 = smul.addr %s213, 4
      %s215 = scalar_lea.vmem %s3, %s214
      %p216 = pneg %p132
      %p217 = pneg %p129
      %p218 = scmp.lt.s32.totalorder %s17, 1
      %s219 = scalar_select %p218, %s17, 1
      %s220 = smul.addr %s219, 2
      %s221 = smul.addr %s220, 4
      %s222 = scalar_lea.vmem %s4, %s221
      %p223 = pneg %p158
      %p224 = pneg %p155
      %p225 = scmp.lt.s32.totalorder %s17, 1
      %s226 = scalar_select %p225, %s17, 1
      %s227 = smul.addr %s226, 2
      %s228 = smul.addr %s227, 8
      %s229 = scalar_lea.vmem %s5, %s228
      %p230 = scmp.lt.s32.totalorder %s17, 1
      %s231 = scalar_select %p230, %s17, 1
      %s232 = smul.addr %s231, 2
      %s233 = smul.addr %s232, 2
      %s234 = scalar_lea.vmem %s0, %s233
      %p235 = scmp.lt.s32.totalorder %s17, 1
      %s236 = scalar_select %p235, %s17, 1
      %s237 = smul.addr %s236, 4
      %s238 = smul.addr %s237, 4
      %s239 = scalar_lea.vmem %s3, %s238
      %p240 = scmp.lt.s32.totalorder %s17, 1
      %s241 = scalar_select %p240, %s17, 1
      %s242 = smul.addr %s241, 2
      %s243 = smul.addr %s242, 4
      %s244 = scalar_lea.vmem %s4, %s243
      %p245 = scmp.lt.s32.totalorder %s17, 1
      %s246 = scalar_select %p245, %s17, 1
      %s247 = smul.addr %s246, 2
      %s248 = smul.addr %s247, 8
      %s249 = scalar_lea.vmem %s5, %s248
      %v251 = vld [vmem:[%s1] sm:$0xf]
      %v252 = vld [vmem:[%s1 + $0x4] sm:$0xf]
      %v253 = vld [vmem:[%s1 + $0x8] sm:$0xf]
      %v254 = vld [vmem:[%s234] sm:$0xf]
      %v258 = vunpack.c.l.b16 %v251
      %v259 = vunpack.c.l.b16 %v252
      %v260 = vunpack.c.l.b16 %v253
      %v261 = vpack.c.b16 %v259, %v258
      %v262 = vpack.c.b16 %v260, %v260
      %264 = vst [vmem:[#allocation1] ss:$4 sm:$0xff] %v254
      %v265 = vld.sshfl [vmem:[#allocation1] sm:$0xff pattern:$0x73625140]
      %v266 = vld.sshfl [vmem:[#allocation1 + $0x8] sm:$0xff pattern:$0x73625140]
      %vm267 = vcmask 31744
      %v269 = vsel %vm267, %v261, 0
      %v272 = vsel %vm267, %v262, 0
      %vm274 = vcmask 1041408
      %v275 = vsel %vm274, %v265, 0
      %v277 = vsel %vm274, %v266, 0
      %279 = vmatpush.bf16.msra.mxu0 0
      %280 = vmatpush.bf16.msra.mxu0 0
      %281 = vmatpush.bf16.msra.mxu0 0
      %282 = vmatpush.bf16.msra.mxu0 0
      %283 = vmatpush.bf16.msra.mxu0 0
      %284 = vmatpush.bf16.msra.mxu0 0
      %285 = vmatpush.bf16.msra.mxu0 0
      %286 = vmatpush.bf16.msra.mxu0 %v275
      %287 = vmatmul.bf16.gmra.mxu0 %v269
      %v288 = vpop.f32.mrf.mxu0
      %v289 = vadd.f32 0.0, %v288
      %v290 = vpop.f32.mrf.mxu0
      %v291 = vadd.f32 0.0, %v290
      %292 = vmatmul.bf16.gmra.mxu0 %v272
      %v293 = vpop.f32.mrf.mxu0
      %v294 = vadd.f32 0.0, %v293
      %v295 = vpop.f32.mrf.mxu0
      %296 = vdwg.mxu0
      %297 = vmatpush.bf16.msra.mxu0 0
      %298 = vmatpush.bf16.msra.mxu0 0
      %299 = vmatpush.bf16.msra.mxu0 0
      %300 = vmatpush.bf16.msra.mxu0 0
      %301 = vmatpush.bf16.msra.mxu0 0
      %302 = vmatpush.bf16.msra.mxu0 0
      %303 = vmatpush.bf16.msra.mxu0 0
      %304 = vmatpush.bf16.msra.mxu0 %v277
      %305 = vmatmul.bf16.gmra.mxu0 %v269
      %v306 = vpop.f32.mrf.mxu0
      %v307 = vadd.f32 0.0, %v306
      %v308 = vpop.f32.mrf.mxu0
      %v309 = vadd.f32 0.0, %v308
      %310 = vmatmul.bf16.gmra.mxu0 %v272
      %v311 = vpop.f32.mrf.mxu0
      %v312 = vadd.f32 0.0, %v311
      %v313 = vpop.f32.mrf.mxu0
      %314 = vdwg.mxu0
      %v315 = vmax.f32 %v289, 0.0
      %v316 = vmax.f32 %v307, 0.0
      %v317 = vmax.f32 %v291, 0.0
      %v318 = vmax.f32 %v309, 0.0
      %v319 = vpack.c.bf16 %v316, %v315
      %v320 = vpack.c.bf16 %v318, %v317
      %321 = vst [vmem:[%s239] sm:$0xff] %v319
      %322 = vst [vmem:[%s239 + $0x8] sm:$0xff] %v320
      %v323 = vpack.c.bf16 %v312, %v294
      %324 = vst [vmem:[%s244] sm:$0xff] %v323
      %v325 = vld [vmem:[%s2] sm:$0xf]
      %v326 = vld [vmem:[%s2 + $0x4] sm:$0xf]
      %v327 = vld [vmem:[%s2 + $0x8] sm:$0xf]
      %v328 = vld [vmem:[%s2 + $0xc] sm:$0xf]
      %v329 = vld [vmem:[%s2 + $0x10] sm:$0xf]
      %v330 = vld [vmem:[%s2 + $0x14] sm:$0xf]
      %v331 = vld [vmem:[%s2 + $0x18] sm:$0xf]
      %v332 = vld [vmem:[%s2 + $0x1c] sm:$0xf]
      %v333 = vld [vmem:[%s2 + $0x20] sm:$0xf]
      %v334 = vld [vmem:[%s2 + $0x24] sm:$0xf]
      %v335 = vld [vmem:[%s2 + $0x28] sm:$0xf]
      %v336 = vld [vmem:[%s2 + $0x2c] sm:$0xf]
      %v337 = vld [vmem:[%s2 + $0x30] sm:$0xf]
      %v338 = vld [vmem:[%s2 + $0x34] sm:$0xf]
      %v339 = vld [vmem:[%s2 + $0x38] sm:$0xf]
      %v340 = vld [vmem:[%s2 + $0x3c] sm:$0xf]
      %v341 = vld [vmem:[%s2 + $0x40] sm:$0xf]
      %v342 = vld [vmem:[%s2 + $0x44] sm:$0xf]
      %v343 = vld [vmem:[%s2 + $0x48] sm:$0xf]
      %v344 = vld [vmem:[%s2 + $0x4c] sm:$0xf]
      %v345 = vld [vmem:[%s2 + $0x50] sm:$0xf]
      %v346 = vld [vmem:[%s2 + $0x54] sm:$0xf]
      %v347 = vld [vmem:[%s2 + $0x58] sm:$0xf]
      %v348 = vld [vmem:[%s2 + $0x5c] sm:$0xf]
      %v349 = vld [vmem:[%s2 + $0x60] sm:$0xf]
      %v350 = vld [vmem:[%s2 + $0x64] sm:$0xf]
      %v351 = vld [vmem:[%s2 + $0x68] sm:$0xf]
      %v352 = vld [vmem:[%s2 + $0x6c] sm:$0xf]
      %v353 = vld [vmem:[%s2 + $0x70] sm:$0xf]
      %v354 = vld [vmem:[%s2 + $0x74] sm:$0xf]
      %v355 = vld [vmem:[%s2 + $0x78] sm:$0xf]
      %v356 = vld [vmem:[%s2 + $0x7c] sm:$0xf]
      %v359 = vunpack.c.l.b16 %v319
      %v360 = vunpack.c.h.b16 %v319
      %v361 = vunpack.c.l.b16 %v320
      %v362 = vunpack.c.h.b16 %v320
      %v363 = vpack.c.b16 %v361, %v359
      %v364 = vpack.c.b16 %v362, %v360
      %v399 = vunpack.c.l.b16 %v325
      %v400 = vunpack.c.l.b16 %v326
      %v401 = vunpack.c.l.b16 %v327
      %v402 = vunpack.c.l.b16 %v328
      %v403 = vunpack.c.l.b16 %v329
      %v404 = vunpack.c.l.b16 %v330
      %v405 = vunpack.c.l.b16 %v331
      %v406 = vunpack.c.l.b16 %v332
      %v407 = vunpack.c.l.b16 %v333
      %v408 = vunpack.c.l.b16 %v334
      %v409 = vunpack.c.l.b16 %v335
      %v410 = vunpack.c.l.b16 %v336
      %v411 = vunpack.c.l.b16 %v337
      %v412 = vunpack.c.l.b16 %v338
      %v413 = vunpack.c.l.b16 %v339
      %v414 = vunpack.c.l.b16 %v340
      %v415 = vunpack.c.l.b16 %v341
      %v416 = vunpack.c.l.b16 %v342
      %v417 = vunpack.c.l.b16 %v343
      %v418 = vunpack.c.l.b16 %v344
      %v419 = vunpack.c.l.b16 %v345
      %v420 = vunpack.c.l.b16 %v346
      %v421 = vunpack.c.l.b16 %v347
      %v422 = vunpack.c.l.b16 %v348
      %v423 = vunpack.c.l.b16 %v349
      %v424 = vunpack.c.l.b16 %v350
      %v425 = vunpack.c.l.b16 %v351
      %v426 = vunpack.c.l.b16 %v352
      %v427 = vunpack.c.l.b16 %v353
      %v428 = vunpack.c.l.b16 %v354
      %v429 = vunpack.c.l.b16 %v355
      %v430 = vunpack.c.l.b16 %v356
      %v431 = vpack.c.b16 %v400, %v399
      %v432 = vpack.c.b16 %v402, %v401
      %v433 = vpack.c.b16 %v404, %v403
      %v434 = vpack.c.b16 %v406, %v405
      %v435 = vpack.c.b16 %v408, %v407
      %v436 = vpack.c.b16 %v410, %v409
      %v437 = vpack.c.b16 %v412, %v411
      %v438 = vpack.c.b16 %v414, %v413
      %v439 = vpack.c.b16 %v416, %v415
      %v440 = vpack.c.b16 %v418, %v417
      %v441 = vpack.c.b16 %v420, %v419
      %v442 = vpack.c.b16 %v422, %v421
      %v443 = vpack.c.b16 %v424, %v423
      %v444 = vpack.c.b16 %v426, %v425
      %v445 = vpack.c.b16 %v428, %v427
      %v446 = vpack.c.b16 %v430, %v429
      %463 = vmatpush.bf16.msra.mxu0 %v438
      %464 = vmatpush.bf16.msra.mxu0 %v437
      %465 = vmatpush.bf16.msra.mxu0 %v436
      %466 = vmatpush.bf16.msra.mxu0 %v435
      %467 = vmatpush.bf16.msra.mxu0 %v434
      %468 = vmatpush.bf16.msra.mxu0 %v433
      %469 = vmatpush.bf16.msra.mxu0 %v432
      %470 = vmatpush.bf16.msra.mxu0 %v431
      %471 = vmatmul.bf16.gmra.mxu0 %v363
      %v472 = vpop.f32.mrf.mxu0
      %v473 = vadd.f32 0.0, %v472
      %v474 = vpop.f32.mrf.mxu0
      %v475 = vadd.f32 0.0, %v474
      %476 = vdwg.mxu0
      %477 = vmatpush.bf16.msra.mxu0 %v446
      %478 = vmatpush.bf16.msra.mxu0 %v445
      %479 = vmatpush.bf16.msra.mxu0 %v444
      %480 = vmatpush.bf16.msra.mxu0 %v443
      %481 = vmatpush.bf16.msra.mxu0 %v442
      %482 = vmatpush.bf16.msra.mxu0 %v441
      %483 = vmatpush.bf16.msra.mxu0 %v440
      %484 = vmatpush.bf16.msra.mxu0 %v439
      %485 = vmatmul.bf16.gmra.mxu0 %v364
      %v486 = vpop.f32.mrf.mxu0
      %v487 = vadd.f32 %v473, %v486
      %v488 = vpop.f32.mrf.mxu0
      %v489 = vadd.f32 %v475, %v488
      %490 = vdwg.mxu0
      %vm491 = vcmask 130048
      %492 = vst.msk [vmem:[%s249] sm:$0xff] %vm491, %v487
      %493 = vst.msk [vmem:[%s249 + $0x8] sm:$0xff] %vm491, %v489
      %p494 = scmp.lt.s32.totalorder %s17, 1
      %s495 = scalar_select %p494, %s17, 1
      %s496 = smul.addr %s495, 4
      %s497 = smul.addr %s496, 4
      %s498 = scalar_lea.vmem %s3, %s497
      %p499 = scmp.lt.s32.totalorder %s17, 1
      %s500 = scalar_select %p499, %s17, 1
      %s501 = smul.addr %s500, 2
      %s502 = smul.addr %s501, 4
      %s503 = scalar_lea.vmem %s4, %s502
      %p504 = scmp.lt.s32.totalorder %s17, 1
      %s505 = scalar_select %p504, %s17, 1
      %s506 = smul.addr %s505, 2
      %s507 = smul.addr %s506, 8
      %s508 = scalar_lea.vmem %s5, %s507
      // Predicated region
      $region33: #{hd_gconv_forward.2} parent=31 // pred_check
        %p509 = pneg %p103
      $region34: #{hd_gconv_forward.2} parent=31 // pred_check_branch
        %511 = sbr.rel (%p509) target = $region36
      $region35: #{hd_gconv_forward.2} parent=31 // pred_region
        _
      $region36: #{hd_gconv_forward.2} parent=31 // pred_fallthru
        _
      // Predicated region
      $region37: #{hd_gconv_forward.2} parent=31 // pred_check
        %p512 = pneg %p129
      $region38: #{hd_gconv_forward.2} parent=31 // pred_check_branch
        %514 = sbr.rel (%p512) target = $region40
      $region39: #{hd_gconv_forward.2} parent=31 // pred_region
        _
      $region40: #{hd_gconv_forward.2} parent=31 // pred_fallthru
        _
      // Predicated region
      $region41: #{hd_gconv_forward.2} parent=31 // pred_check
        %p515 = pneg %p155
      $region42: #{hd_gconv_forward.2} parent=31 // pred_check_branch
        %517 = sbr.rel (%p515) target = $region44
      $region43: #{hd_gconv_forward.2} parent=31 // pred_region
        _
      $region44: #{hd_gconv_forward.2} parent=31 // pred_fallthru
        _
    $region32: #{hd_gconv_forward.2} parent=5 // pred_fallthru
      _
    %p518 = scmp.le.s32.totalorder 2, %s12
    // Predicated region
    $region45: #{hd_gconv_forward.2} parent=5 // pred_check
      %p519 = pneg %p518
    $region46: #{hd_gconv_forward.2} parent=5 // pred_check_branch
      %521 = sbr.rel (%p519) target = $region48
    $region47: #{hd_gconv_forward.2} parent=5 // pred_region
      %s522 = ssub.s32 %s12, 2
      // Predicated region
      $region49: #{hd_gconv_forward.2} parent=47 // pred_check
        %p523 = pneg %p109
      $region50: #{hd_gconv_forward.2} parent=47 // pred_check_branch
        %525 = sbr.rel (%p523) target = $region52
      $region51: #{hd_gconv_forward.2} parent=47 // pred_region
        %p526 = scmp.lt.s32.totalorder %s18, 1
        %s527 = scalar_select %p526, %s18, 1
        %s528 = smul.addr %s527, 4
        %s529 = smul.addr %s528, 4
        %s530 = scalar_lea.vmem %s3, %s529
      $region52: #{hd_gconv_forward.2} parent=47 // pred_fallthru
        _
      // Predicated region
      $region53: #{hd_gconv_forward.2} parent=47 // pred_check
        %p531 = pneg %p135
      $region54: #{hd_gconv_forward.2} parent=47 // pred_check_branch
        %533 = sbr.rel (%p531) target = $region56
      $region55: #{hd_gconv_forward.2} parent=47 // pred_region
        %p534 = scmp.lt.s32.totalorder %s18, 1
        %s535 = scalar_select %p534, %s18, 1
        %s536 = smul.addr %s535, 2
        %s537 = smul.addr %s536, 4
        %s538 = scalar_lea.vmem %s4, %s537
      $region56: #{hd_gconv_forward.2} parent=47 // pred_fallthru
        _
      // Predicated region
      $region57: #{hd_gconv_forward.2} parent=47 // pred_check
        %p539 = pneg %p161
      $region58: #{hd_gconv_forward.2} parent=47 // pred_check_branch
        %541 = sbr.rel (%p539) target = $region60
      $region59: #{hd_gconv_forward.2} parent=47 // pred_region
        %p542 = scmp.lt.s32.totalorder %s18, 1
        %s543 = scalar_select %p542, %s18, 1
        %s544 = smul.addr %s543, 2
        %s545 = smul.addr %s544, 8
        %s546 = scalar_lea.vmem %s5, %s545
      $region60: #{hd_gconv_forward.2} parent=47 // pred_fallthru
        _
    $region48: #{hd_gconv_forward.2} parent=5 // pred_fallthru
      _
  $region6: #{hd_gconv_forward.2} parent=0 // loop_footer
    %s16 = sadd.s32 1, %s12
  $region7: #{hd_gconv_forward.2} parent=0 // loop_footer_branch
    %11 = sbr.rel target = $region3
  $region8: #{hd_gconv_forward.2} parent=0 // loop_exit
    _

// kernel: hd_gconv_forward.3
$region0: #{hd_gconv_forward.3}
  #allocation0 [shape = 'u32[]', space=smem, size = 0x4, offset = 0x4, fixed_abs, tag = 'smem constant byte address 0x4 - core index']
  #allocation1 [shape = 'u32[72,128]{1,0:T(1,128)}', space=vmem, size = 0x9000, scoped, tag = 'internal scratch']
  #allocation2 [shape = 'f32[8,256]{1,0:T(8,128)}', space=vmem, size = 0x2000, scoped, tag = 'scratch operand']
  %s0 = inlined_call_operand.vmem [shape: bf16[2,16,256], index: 0, kind: input, shape index: {}]
  %s1 = inlined_call_operand.vmem [shape: bf16[2,8,256], index: 1, kind: input, shape index: {}]
  %s2 = inlined_call_operand.vmem [shape: bf16[2,10,256,256], index: 2, kind: input, shape index: {}]
  %s3 = inlined_call_operand.vmem [shape: bf16[2,10,8,8], index: 3, kind: input, shape index: {}]
  %s4 = inlined_call_operand.vmem [shape: bf16[2,2,5,16,16], index: 4, kind: input, shape index: {}]
  %s5 = inlined_call_operand.vmem [shape: bf16[2,8,16], index: 5, kind: input, shape index: {}]
  %s6 = inlined_call_operand.vmem [shape: bf16[16,256], index: 6, kind: input, shape index: {}]
  %s7 = inlined_call_operand.vmem [shape: f32[2,8,256], index: 7, kind: output, shape index: {}]
  %s8 = sld [smem:[#allocation0]]
  $region73: #{hd_gconv_forward.3} parent=0
    _
  %s10 = ssub.s32 1, %s8
  %s11 = scalar_select 0, %s10, %s8
  loop: start=0, step=1, limit=42
  $region2: #{hd_gconv_forward.3} parent=0 // loop_pre_header
    _
  $region3: #{hd_gconv_forward.3} parent=0 // loop_header
    %s13 = sphi 0, %s17
    %p14 = scmp.ge.s32.totalorder %s13, 42
    %s20 = sphi 0, %s39
    %s21 = sphi 0, %s35
    %s22 = sphi 0, %s31
    %s23 = sphi 0, %s20
    %s24 = sphi 0, %s21
    %s25 = sphi 0, %s22
    %s26 = sphi 0, %s23
    %s27 = sphi 0, %s24
    %s28 = sphi 0, %s25
    %s44 = sphi 0, %s46
    %s47 = sphi 0, %s44
    %s48 = sphi 0, %s47
    %s64 = sphi 0, %s48
    %s70 = sphi 0, %s72
    %s73 = sphi 0, %s70
    %s74 = sphi 0, %s73
    %s90 = sphi 0, %s74
    %s98 = sphi 0, %s100
    %s101 = sphi 0, %s98
    %s102 = sphi 0, %s101
    %s118 = sphi 0, %s102
    %s126 = sphi 0, %s128
    %s129 = sphi 0, %s126
    %s130 = sphi 0, %s129
    %s146 = sphi 0, %s130
    %s154 = sphi 0, %s156
    %s157 = sphi 0, %s154
    %s158 = sphi 0, %s157
    %s174 = sphi 0, %s158
    %s180 = sphi 0, %s182
    %s183 = sphi 0, %s180
    %s184 = sphi 0, %s183
    %s200 = sphi 0, %s184
    %s204 = sphi 0, %s204
    %s206 = sphi 0, %s204
    %s207 = sphi 0, %s206
    %s221 = sphi 0, %s207
    %s227 = sphi 0, %s229
    %s230 = sphi 0, %s227
    %s231 = sphi 0, %s230
    %s247 = sphi 0, %s231
  $region4: #{hd_gconv_forward.3} parent=0 // loop_header_branch
    %16 = sbr.rel (%p14) target = $region8
  $region5: #{hd_gconv_forward.3} parent=0 // loop_body
    %s18 = ssub.s32 %s13, 1
    %s19 = ssub.s32 %s13, 2
    %s29 = sadd.s32 1, %s22
    %p30 = scmp.ge.s32.totalorder %s29, 10
    %s31 = scalar_select %p30, 0, %s29
    %s32 = sadd.s32 1, %s21
    %s33 = scalar_select %p30, %s32, %s21
    %p34 = scmp.ge.s32.totalorder %s33, 2
    %s35 = scalar_select %p34, 0, %s33
    %s36 = sadd.s32 1, %s20
    %s37 = scalar_select %p34, %s36, %s20
    %p38 = scmp.ge.s32.totalorder %s37, 2
    %s39 = scalar_select %p38, 0, %s37
    %s40 = ssub.s32 %s20, %s39
    %s41 = ssub.s32 %s21, %s35
    %s42 = sor.u32 %s40, %s41
    %p43 = scmp.eq.s32.totalorder %s42, 0
    %s45 = sadd.s32 %s44, 1
    %s46 = scalar_select %p43, %s44, %s45
    %p49 = pneg %p43
    %p50 = scmp.eq.s32.totalorder %s13, 39
    %p51 = por %p49, %p50
    %p52 = scmp.ne.s32.totalorder %s44, %s47
    %p53 = scmp.eq.s32.totalorder %s13, 0
    %p54 = por %p52, %p53
    %p55 = scmp.ne.s32.totalorder %s44, %s47
    %p56 = scmp.eq.s32.totalorder %s18, 39
    %p57 = por %p55, %p56
    %p58 = scmp.ne.s32.totalorder %s47, %s48
    %p59 = scmp.eq.s32.totalorder %s18, 0
    %p60 = por %p58, %p59
    %p61 = scmp.ne.s32.totalorder %s47, %s48
    %p62 = scmp.eq.s32.totalorder %s19, 39
    %p63 = por %p61, %p62
    %p65 = scmp.ne.s32.totalorder %s48, %s64
    %p66 = scmp.eq.s32.totalorder %s19, 0
    %p67 = por %p65, %p66
    %s68 = ssub.s32 %s20, %s39
    %p69 = scmp.eq.s32.totalorder %s68, 0
    %s71 = sadd.s32 %s70, 1
    %s72 = scalar_select %p69, %s70, %s71
    %p75 = pneg %p69
    %p76 = scmp.eq.s32.totalorder %s13, 39
    %p77 = por %p75, %p76
    %p78 = scmp.ne.s32.totalorder %s70, %s73
    %p79 = scmp.eq.s32.totalorder %s13, 0
    %p80 = por %p78, %p79
    %p81 = scmp.ne.s32.totalorder %s70, %s73
    %p82 = scmp.eq.s32.totalorder %s18, 39
    %p83 = por %p81, %p82
    %p84 = scmp.ne.s32.totalorder %s73, %s74
    %p85 = scmp.eq.s32.totalorder %s18, 0
    %p86 = por %p84, %p85
    %p87 = scmp.ne.s32.totalorder %s73, %s74
    %p88 = scmp.eq.s32.totalorder %s19, 39
    %p89 = por %p87, %p88
    %p91 = scmp.ne.s32.totalorder %s74, %s90
    %p92 = scmp.eq.s32.totalorder %s19, 0
    %p93 = por %p91, %p92
    %s94 = ssub.s32 %s21, %s35
    %s95 = ssub.s32 %s22, %s31
    %s96 = sor.u32 %s94, %s95
    %p97 = scmp.eq.s32.totalorder %s96, 0
    %s99 = sadd.s32 %s98, 1
    %s100 = scalar_select %p97, %s98, %s99
    %p103 = pneg %p97
    %p104 = scmp.eq.s32.totalorder %s13, 39
    %p105 = por %p103, %p104
    %p106 = scmp.ne.s32.totalorder %s98, %s101
    %p107 = scmp.eq.s32.totalorder %s13, 0
    %p108 = por %p106, %p107
    %p109 = scmp.ne.s32.totalorder %s98, %s101
    %p110 = scmp.eq.s32.totalorder %s18, 39
    %p111 = por %p109, %p110
    %p112 = scmp.ne.s32.totalorder %s101, %s102
    %p113 = scmp.eq.s32.totalorder %s18, 0
    %p114 = por %p112, %p113
    %p115 = scmp.ne.s32.totalorder %s101, %s102
    %p116 = scmp.eq.s32.totalorder %s19, 39
    %p117 = por %p115, %p116
    %p119 = scmp.ne.s32.totalorder %s102, %s118
    %p120 = scmp.eq.s32.totalorder %s19, 0
    %p121 = por %p119, %p120
    %s122 = ssub.s32 %s21, %s35
    %s123 = ssub.s32 %s22, %s31
    %s124 = sor.u32 %s122, %s123
    %p125 = scmp.eq.s32.totalorder %s124, 0
    %s127 = sadd.s32 %s126, 1
    %s128 = scalar_select %p125, %s126, %s127
    %p131 = pneg %p125
    %p132 = scmp.eq.s32.totalorder %s13, 39
    %p133 = por %p131, %p132
    %p134 = scmp.ne.s32.totalorder %s126, %s129
    %p135 = scmp.eq.s32.totalorder %s13, 0
    %p136 = por %p134, %p135
    %p137 = scmp.ne.s32.totalorder %s126, %s129
    %p138 = scmp.eq.s32.totalorder %s18, 39
    %p139 = por %p137, %p138
    %p140 = scmp.ne.s32.totalorder %s129, %s130
    %p141 = scmp.eq.s32.totalorder %s18, 0
    %p142 = por %p140, %p141
    %p143 = scmp.ne.s32.totalorder %s129, %s130
    %p144 = scmp.eq.s32.totalorder %s19, 39
    %p145 = por %p143, %p144
    %p147 = scmp.ne.s32.totalorder %s130, %s146
    %p148 = scmp.eq.s32.totalorder %s19, 0
    %p149 = por %p147, %p148
    %s150 = ssub.s32 %s20, %s39
    %s151 = ssub.s32 %s21, %s35
    %s152 = sor.u32 %s150, %s151
    %p153 = scmp.eq.s32.totalorder %s152, 0
    %s155 = sadd.s32 %s154, 1
    %s156 = scalar_select %p153, %s154, %s155
    %p159 = pneg %p153
    %p160 = scmp.eq.s32.totalorder %s13, 39
    %p161 = por %p159, %p160
    %p162 = scmp.ne.s32.totalorder %s154, %s157
    %p163 = scmp.eq.s32.totalorder %s13, 0
    %p164 = por %p162, %p163
    %p165 = scmp.ne.s32.totalorder %s154, %s157
    %p166 = scmp.eq.s32.totalorder %s18, 39
    %p167 = por %p165, %p166
    %p168 = scmp.ne.s32.totalorder %s157, %s158
    %p169 = scmp.eq.s32.totalorder %s18, 0
    %p170 = por %p168, %p169
    %p171 = scmp.ne.s32.totalorder %s157, %s158
    %p172 = scmp.eq.s32.totalorder %s19, 39
    %p173 = por %p171, %p172
    %p175 = scmp.ne.s32.totalorder %s158, %s174
    %p176 = scmp.eq.s32.totalorder %s19, 0
    %p177 = por %p175, %p176
    %s178 = ssub.s32 %s21, %s35
    %p179 = scmp.eq.s32.totalorder %s178, 0
    %s181 = sadd.s32 %s180, 1
    %s182 = scalar_select %p179, %s180, %s181
    %p185 = pneg %p179
    %p186 = scmp.eq.s32.totalorder %s13, 39
    %p187 = por %p185, %p186
    %p188 = scmp.ne.s32.totalorder %s180, %s183
    %p189 = scmp.eq.s32.totalorder %s13, 0
    %p190 = por %p188, %p189
    %p191 = scmp.ne.s32.totalorder %s180, %s183
    %p192 = scmp.eq.s32.totalorder %s18, 39
    %p193 = por %p191, %p192
    %p194 = scmp.ne.s32.totalorder %s183, %s184
    %p195 = scmp.eq.s32.totalorder %s18, 0
    %p196 = por %p194, %p195
    %p197 = scmp.ne.s32.totalorder %s183, %s184
    %p198 = scmp.eq.s32.totalorder %s19, 39
    %p199 = por %p197, %p198
    %p201 = scmp.ne.s32.totalorder %s184, %s200
    %p202 = scmp.eq.s32.totalorder %s19, 0
    %p203 = por %p201, %p202
    %s205 = sadd.s32 %s204, 1
    %p208 = scmp.eq.s32.totalorder %s13, 39
    %p209 = scmp.ne.s32.totalorder %s204, %s206
    %p210 = scmp.eq.s32.totalorder %s13, 0
    %p211 = por %p209, %p210
    %p212 = scmp.ne.s32.totalorder %s204, %s206
    %p213 = scmp.eq.s32.totalorder %s18, 39
    %p214 = por %p212, %p213
    %p215 = scmp.ne.s32.totalorder %s206, %s207
    %p216 = scmp.eq.s32.totalorder %s18, 0
    %p217 = por %p215, %p216
    %p218 = scmp.ne.s32.totalorder %s206, %s207
    %p219 = scmp.eq.s32.totalorder %s19, 39
    %p220 = por %p218, %p219
    %p222 = scmp.ne.s32.totalorder %s207, %s221
    %p223 = scmp.eq.s32.totalorder %s19, 0
    %p224 = por %p222, %p223
    %s225 = ssub.s32 %s20, %s39
    %p226 = scmp.eq.s32.totalorder %s225, 0
    %s228 = sadd.s32 %s227, 1
    %s229 = scalar_select %p226, %s227, %s228
    %p232 = pneg %p226
    %p233 = scmp.eq.s32.totalorder %s13, 39
    %p234 = por %p232, %p233
    %p235 = scmp.ne.s32.totalorder %s227, %s230
    %p236 = scmp.eq.s32.totalorder %s13, 0
    %p237 = por %p235, %p236
    %p238 = scmp.ne.s32.totalorder %s227, %s230
    %p239 = scmp.eq.s32.totalorder %s18, 39
    %p240 = por %p238, %p239
    %p241 = scmp.ne.s32.totalorder %s230, %s231
    %p242 = scmp.eq.s32.totalorder %s18, 0
    %p243 = por %p241, %p242
    %p244 = scmp.ne.s32.totalorder %s230, %s231
    %p245 = scmp.eq.s32.totalorder %s19, 39
    %p246 = por %p244, %p245
    %p248 = scmp.ne.s32.totalorder %s231, %s247
    %p249 = scmp.eq.s32.totalorder %s19, 0
    %p250 = por %p248, %p249
    %p251 = scmp.le.s32.totalorder 1, %s13
    %p252 = scmp.lt.s32.totalorder %s13, 41
    %p253 = pnand %p251, %p252
    %p254 = pneg %p253
    // Predicated region
    $region9: #{hd_gconv_forward.3} parent=5 // pred_check
      _
    $region10: #{hd_gconv_forward.3} parent=5 // pred_check_branch
      %256 = sbr.rel (%p253) target = $region12
    $region11: #{hd_gconv_forward.3} parent=5 // pred_region
      %s257 = ssub.s32 %s13, 1
      // Predicated region
      $region13: #{hd_gconv_forward.3} parent=11 // pred_check
        %p258 = pneg %p217
      $region14: #{hd_gconv_forward.3} parent=11 // pred_check_branch
        %260 = sbr.rel (%p258) target = $region16
      $region15: #{hd_gconv_forward.3} parent=11 // pred_region
        _
      $region16: #{hd_gconv_forward.3} parent=11 // pred_fallthru
        _
    $region12: #{hd_gconv_forward.3} parent=5 // pred_fallthru
      _
    %p261 = scmp.lt.s32.totalorder %s13, 40
    // Predicated region
    $region17: #{hd_gconv_forward.3} parent=5 // pred_check
      %p262 = pneg %p261
    $region18: #{hd_gconv_forward.3} parent=5 // pred_check_branch
      %264 = sbr.rel (%p262) target = $region20
    $region19: #{hd_gconv_forward.3} parent=5 // pred_region
      // Predicated region
      $region21: #{hd_gconv_forward.3} parent=19 // pred_check
        %p265 = pneg %p54
      $region22: #{hd_gconv_forward.3} parent=19 // pred_check_branch
        %267 = sbr.rel (%p265) target = $region24
      $region23: #{hd_gconv_forward.3} parent=19 // pred_region
        %p268 = scmp.lt.s32.totalorder %s20, 1
        %s269 = scalar_select %p268, %s20, 1
        %p270 = scmp.lt.s32.totalorder %s21, 1
        %s271 = scalar_select %p270, %s21, 1
        %s272 = smul.addr %s271, 2
        %s273 = smul.addr %s269, 4
        %s274 = sadd.s32 %s272, %s273
        %s275 = smul.addr %s274, 4
        %s276 = scalar_lea.vmem %s0, %s275
      $region24: #{hd_gconv_forward.3} parent=19 // pred_fallthru
        _
      // Predicated region
      $region25: #{hd_gconv_forward.3} parent=19 // pred_check
        %p277 = pneg %p80
      $region26: #{hd_gconv_forward.3} parent=19 // pred_check_branch
        %279 = sbr.rel (%p277) target = $region28
      $region27: #{hd_gconv_forward.3} parent=19 // pred_region
        %p280 = scmp.lt.s32.totalorder %s20, 1
        %s281 = scalar_select %p280, %s20, 1
        %s282 = smul.addr %s281, 2
        %s283 = smul.addr %s282, 4
        %s284 = scalar_lea.vmem %s1, %s283
      $region28: #{hd_gconv_forward.3} parent=19 // pred_fallthru
        _
      // Predicated region
      $region29: #{hd_gconv_forward.3} parent=19 // pred_check
        %p285 = pneg %p108
      $region30: #{hd_gconv_forward.3} parent=19 // pred_check_branch
        %287 = sbr.rel (%p285) target = $region32
      $region31: #{hd_gconv_forward.3} parent=19 // pred_region
        %p288 = scmp.lt.s32.totalorder %s21, 1
        %s289 = scalar_select %p288, %s21, 1
        %p290 = scmp.lt.s32.totalorder %s22, 9
        %s291 = scalar_select %p290, %s22, 9
        %s292 = smul.addr %s291, 64
        %s293 = smul.addr %s289, 640
        %s294 = sadd.s32 %s292, %s293
        %s295 = smul.addr %s294, 4
        %s296 = scalar_lea.vmem %s2, %s295
      $region32: #{hd_gconv_forward.3} parent=19 // pred_fallthru
        _
      // Predicated region
      $region33: #{hd_gconv_forward.3} parent=19 // pred_check
        %p297 = pneg %p136
      $region34: #{hd_gconv_forward.3} parent=19 // pred_check_branch
        %299 = sbr.rel (%p297) target = $region36
      $region35: #{hd_gconv_forward.3} parent=19 // pred_region
        %p300 = scmp.lt.s32.totalorder %s21, 1
        %s301 = scalar_select %p300, %s21, 1
        %p302 = scmp.lt.s32.totalorder %s22, 9
        %s303 = scalar_select %p302, %s22, 9
        %s304 = smul.addr %s301, 10
        %s305 = sadd.s32 %s303, %s304
        %s306 = smul.addr %s305, 4
        %s307 = scalar_lea.vmem %s3, %s306
      $region36: #{hd_gconv_forward.3} parent=19 // pred_fallthru
        _
      // Predicated region
      $region37: #{hd_gconv_forward.3} parent=19 // pred_check
        %p308 = pneg %p164
      $region38: #{hd_gconv_forward.3} parent=19 // pred_check_branch
        %310 = sbr.rel (%p308) target = $region40
      $region39: #{hd_gconv_forward.3} parent=19 // pred_region
        %p311 = scmp.lt.s32.totalorder %s20, 1
        %s312 = scalar_select %p311, %s20, 1
        %p313 = scmp.lt.s32.totalorder %s21, 1
        %s314 = scalar_select %p313, %s21, 1
        %s315 = smul.addr %s314, 10
        %s316 = smul.addr %s312, 20
        %s317 = sadd.s32 %s315, %s316
        %s318 = smul.addr %s317, 4
        %s319 = scalar_lea.vmem %s4, %s318
      $region40: #{hd_gconv_forward.3} parent=19 // pred_fallthru
        _
      // Predicated region
      $region41: #{hd_gconv_forward.3} parent=19 // pred_check
        %p320 = pneg %p190
      $region42: #{hd_gconv_forward.3} parent=19 // pred_check_branch
        %322 = sbr.rel (%p320) target = $region44
      $region43: #{hd_gconv_forward.3} parent=19 // pred_region
        %p323 = scmp.lt.s32.totalorder %s21, 1
        %s324 = scalar_select %p323, %s21, 1
        %s325 = smul.addr %s324, 4
        %s326 = scalar_lea.vmem %s5, %s325
      $region44: #{hd_gconv_forward.3} parent=19 // pred_fallthru
        _
    $region20: #{hd_gconv_forward.3} parent=5 // pred_fallthru
      _
    %p327 = scmp.le.s32.totalorder 1, %s13
    %p328 = scmp.lt.s32.totalorder %s13, 41
    %p329 = pnand %p327, %p328
    %p330 = pneg %p329
    // Predicated region
    $region45: #{hd_gconv_forward.3} parent=5 // pred_check
      _
    $region46: #{hd_gconv_forward.3} parent=5 // pred_check_branch
      %332 = sbr.rel (%p329) target = $region48
    $region47: #{hd_gconv_forward.3} parent=5 // pred_region
      %s333 = ssub.s32 %s13, 1
      %p334 = scmp.lt.s32.totalorder %s23, 1
      %s335 = scalar_select %p334, %s23, 1
      %p336 = scmp.lt.s32.totalorder %s24, 1
      %s337 = scalar_select %p336, %s24, 1
      %s338 = smul.addr %s337, 2
      %s339 = smul.addr %s335, 4
      %s340 = sadd.s32 %s338, %s339
      %s341 = smul.addr %s340, 4
      %s342 = scalar_lea.vmem %s0, %s341
      %p343 = pneg %p60
      %p344 = pneg %p57
      %p345 = scmp.lt.s32.totalorder %s23, 1
      %s346 = scalar_select %p345, %s23, 1
      %s347 = smul.addr %s346, 2
      %s348 = smul.addr %s347, 4
      %s349 = scalar_lea.vmem %s1, %s348
      %p350 = pneg %p86
      %p351 = pneg %p83
      %p352 = scmp.lt.s32.totalorder %s24, 1
      %s353 = scalar_select %p352, %s24, 1
      %p354 = scmp.lt.s32.totalorder %s25, 9
      %s355 = scalar_select %p354, %s25, 9
      %s356 = smul.addr %s355, 64
      %s357 = smul.addr %s353, 640
      %s358 = sadd.s32 %s356, %s357
      %s359 = smul.addr %s358, 4
      %s360 = scalar_lea.vmem %s2, %s359
      %p361 = pneg %p114
      %p362 = pneg %p111
      %p363 = scmp.lt.s32.totalorder %s24, 1
      %s364 = scalar_select %p363, %s24, 1
      %p365 = scmp.lt.s32.totalorder %s25, 9
      %s366 = scalar_select %p365, %s25, 9
      %s367 = smul.addr %s364, 10
      %s368 = sadd.s32 %s366, %s367
      %s369 = smul.addr %s368, 4
      %s370 = scalar_lea.vmem %s3, %s369
      %p371 = pneg %p142
      %p372 = pneg %p139
      %p373 = scmp.lt.s32.totalorder %s23, 1
      %s374 = scalar_select %p373, %s23, 1
      %p375 = scmp.lt.s32.totalorder %s24, 1
      %s376 = scalar_select %p375, %s24, 1
      %s377 = smul.addr %s376, 10
      %s378 = smul.addr %s374, 20
      %s379 = sadd.s32 %s377, %s378
      %s380 = smul.addr %s379, 4
      %s381 = scalar_lea.vmem %s4, %s380
      %p382 = pneg %p170
      %p383 = pneg %p167
      %p384 = scmp.lt.s32.totalorder %s24, 1
      %s385 = scalar_select %p384, %s24, 1
      %s386 = smul.addr %s385, 4
      %s387 = scalar_lea.vmem %s5, %s386
      %p388 = pneg %p196
      %p389 = pneg %p193
      %p390 = pneg %p217
      %p391 = pneg %p214
      %p392 = pneg %p243
      %p393 = pneg %p240
      %p394 = scmp.lt.s32.totalorder %s23, 1
      %s395 = scalar_select %p394, %s23, 1
      %s396 = smul.addr %s395, 2
      %s397 = smul.addr %s396, 8
      %s398 = scalar_lea.vmem %s7, %s397
      %p399 = scmp.lt.s32.totalorder %s23, 1
      %s400 = scalar_select %p399, %s23, 1
      %p401 = scmp.lt.s32.totalorder %s24, 1
      %s402 = scalar_select %p401, %s24, 1
      %s403 = smul.addr %s402, 2
      %s404 = smul.addr %s400, 4
      %s405 = sadd.s32 %s403, %s404
      %s406 = smul.addr %s405, 4
      %s407 = scalar_lea.vmem %s0, %s406
      %p408 = scmp.lt.s32.totalorder %s23, 1
      %s409 = scalar_select %p408, %s23, 1
      %s410 = smul.addr %s409, 2
      %s411 = smul.addr %s410, 4
      %s412 = scalar_lea.vmem %s1, %s411
      %p413 = scmp.lt.s32.totalorder %s24, 1
      %s414 = scalar_select %p413, %s24, 1
      %p415 = scmp.lt.s32.totalorder %s25, 9
      %s416 = scalar_select %p415, %s25, 9
      %s417 = smul.addr %s416, 64
      %s418 = smul.addr %s414, 640
      %s419 = sadd.s32 %s417, %s418
      %s420 = smul.addr %s419, 4
      %s421 = scalar_lea.vmem %s2, %s420
      %p422 = scmp.lt.s32.totalorder %s24, 1
      %s423 = scalar_select %p422, %s24, 1
      %p424 = scmp.lt.s32.totalorder %s25, 9
      %s425 = scalar_select %p424, %s25, 9
      %s426 = smul.addr %s423, 10
      %s427 = sadd.s32 %s425, %s426
      %s428 = smul.addr %s427, 4
      %s429 = scalar_lea.vmem %s3, %s428
      %p430 = scmp.lt.s32.totalorder %s23, 1
      %s431 = scalar_select %p430, %s23, 1
      %p432 = scmp.lt.s32.totalorder %s24, 1
      %s433 = scalar_select %p432, %s24, 1
      %s434 = smul.addr %s433, 10
      %s435 = smul.addr %s431, 20
      %s436 = sadd.s32 %s434, %s435
      %s437 = smul.addr %s436, 4
      %s438 = scalar_lea.vmem %s4, %s437
      %p439 = scmp.lt.s32.totalorder %s24, 1
      %s440 = scalar_select %p439, %s24, 1
      %s441 = smul.addr %s440, 4
      %s442 = scalar_lea.vmem %s5, %s441
      %p443 = scmp.lt.s32.totalorder %s23, 1
      %s444 = scalar_select %p443, %s23, 1
      %s445 = smul.addr %s444, 2
      %s446 = smul.addr %s445, 8
      %s447 = scalar_lea.vmem %s7, %s446
      %p449 = scmp.eq.s32.totalorder %s24, 0
      %p450 = scmp.eq.s32.totalorder %s25, 0
      %p451 = pnand %p449, %p450
      %p452 = pneg %p451
      // Predicated region
      $region49: #{hd_gconv_forward.3} parent=47 // pred_check
        _
      $region50: #{hd_gconv_forward.3} parent=47 // pred_check_branch
        %454 = sbr.rel (%p451) target = $region52
      $region51: #{hd_gconv_forward.3} parent=47 // pred_region
        %455 = vst [vmem:[#allocation2] sm:$0xff] 0.0
        %456 = vst [vmem:[#allocation2 + $0x8] sm:$0xff] 0.0
      $region52: #{hd_gconv_forward.3} parent=47 // pred_fallthru
        _
      // Predicated region
      $region53: #{hd_gconv_forward.3} parent=47 // pred_check
        %p457 = pneg %p450
      $region54: #{hd_gconv_forward.3} parent=47 // pred_check_branch
        %459 = sbr.rel (%p457) target = $region56
      $region55: #{hd_gconv_forward.3} parent=47 // pred_region
        %v460 = vld [vmem:[%s438] sm:$0xf]
        %v461 = vld [vmem:[%s438 + $0x4] sm:$0xf]
        %v462 = vld [vmem:[%s438 + $0x8] sm:$0xf]
        %v463 = vld [vmem:[%s438 + $0xc] sm:$0xf]
        %v464 = vld [vmem:[%s438 + $0x10] sm:$0xf]
        %v465 = vld [vmem:[%s438 + $0x14] sm:$0xf]
        %v466 = vld [vmem:[%s438 + $0x18] sm:$0xf]
        %v467 = vld [vmem:[%s438 + $0x1c] sm:$0xf]
        %v468 = vld [vmem:[%s438 + $0x20] sm:$0xf]
        %v469 = vld [vmem:[%s438 + $0x24] sm:$0xf]
        %v470 = vld [vmem:[%s442] sm:$0xf]
        %v473 = vunpack.c.l.b16 %v460
        %v474 = vunpack.c.l.b16 %v461
        %v475 = vpack.c.b16 %v474, %v473
        %vm477 = vcmask 130048
        %v479 = vsel %vm477, %v470, 0
        %481 = vmatpush.bf16.msra.mxu0 0
        %482 = vmatpush.bf16.msra.mxu0 0
        %483 = vmatpush.bf16.msra.mxu0 0
        %484 = vmatpush.bf16.msra.mxu0 0
        %485 = vmatpush.bf16.msra.mxu0 0
        %486 = vmatpush.bf16.msra.mxu0 0
        %487 = vmatpush.bf16.msra.mxu0 0
        %488 = vmatpush.bf16.msra.mxu0 %v475
        %489 = vmatmul.bf16.gmra.mxu0 %v479
        %v490 = vpop.f32.mrf.mxu0
        %v491 = vadd.f32 0.0, %v490
        %v492 = vpop.f32.mrf.mxu0
        %493 = vdwg.mxu0
        %vm494 = vcmp.ge.f32.partialorder %v491, 0.0
        %v495 = vmul.f32 %v491, 0.2
        %v496 = vsel %vm494, %v491, %v495
        %v499 = vunpack.c.l.b16 %v462
        %v500 = vunpack.c.l.b16 %v463
        %v501 = vpack.c.b16 %v500, %v499
        %503 = vmatpush.bf16.msra.mxu0 0
        %504 = vmatpush.bf16.msra.mxu0 0
        %505 = vmatpush.bf16.msra.mxu0 0
        %506 = vmatpush.bf16.msra.mxu0 0
        %507 = vmatpush.bf16.msra.mxu0 0
        %508 = vmatpush.bf16.msra.mxu0 0
        %509 = vmatpush.bf16.msra.mxu0 0
        %510 = vmatpush.bf16.msra.mxu0 %v501
        %511 = vmatmul.bf16.gmra.mxu0 %v479
        %v512 = vpop.f32.mrf.mxu0
        %v513 = vadd.f32 0.0, %v512
        %v514 = vpop.f32.mrf.mxu0
        %515 = vdwg.mxu0
        %vm516 = vcmp.ge.f32.partialorder %v513, 0.0
        %v517 = vmul.f32 %v513, 0.2
        %v518 = vsel %vm516, %v513, %v517
        %v519 = vmax.f32 %v496, %v518
        %v522 = vunpack.c.l.b16 %v464
        %v523 = vunpack.c.l.b16 %v465
        %v524 = vpack.c.b16 %v523, %v522
        %526 = vmatpush.bf16.msra.mxu0 0
        %527 = vmatpush.bf16.msra.mxu0 0
        %528 = vmatpush.bf16.msra.mxu0 0
        %529 = vmatpush.bf16.msra.mxu0 0
        %530 = vmatpush.bf16.msra.mxu0 0
        %531 = vmatpush.bf16.msra.mxu0 0
        %532 = vmatpush.bf16.msra.mxu0 0
        %533 = vmatpush.bf16.msra.mxu0 %v524
        %534 = vmatmul.bf16.gmra.mxu0 %v479
        %v535 = vpop.f32.mrf.mxu0
        %v536 = vadd.f32 0.0, %v535
        %v537 = vpop.f32.mrf.mxu0
        %538 = vdwg.mxu0
        %vm539 = vcmp.ge.f32.partialorder %v536, 0.0
        %v540 = vmul.f32 %v536, 0.2
        %v541 = vsel %vm539, %v536, %v540
        %v542 = vmax.f32 %v519, %v541
        %v545 = vunpack.c.l.b16 %v466
        %v546 = vunpack.c.l.b16 %v467
        %v547 = vpack.c.b16 %v546, %v545
        %549 = vmatpush.bf16.msra.mxu0 0
        %550 = vmatpush.bf16.msra.mxu0 0
        %551 = vmatpush.bf16.msra.mxu0 0
        %552 = vmatpush.bf16.msra.mxu0 0
        %553 = vmatpush.bf16.msra.mxu0 0
        %554 = vmatpush.bf16.msra.mxu0 0
        %555 = vmatpush.bf16.msra.mxu0 0
        %556 = vmatpush.bf16.msra.mxu0 %v547
        %557 = vmatmul.bf16.gmra.mxu0 %v479
        %v558 = vpop.f32.mrf.mxu0
        %v559 = vadd.f32 0.0, %v558
        %v560 = vpop.f32.mrf.mxu0
        %561 = vdwg.mxu0
        %vm562 = vcmp.ge.f32.partialorder %v559, 0.0
        %v563 = vmul.f32 %v559, 0.2
        %v564 = vsel %vm562, %v559, %v563
        %v565 = vmax.f32 %v542, %v564
        %v568 = vunpack.c.l.b16 %v468
        %v569 = vunpack.c.l.b16 %v469
        %v570 = vpack.c.b16 %v569, %v568
        %572 = vmatpush.bf16.msra.mxu0 0
        %573 = vmatpush.bf16.msra.mxu0 0
        %574 = vmatpush.bf16.msra.mxu0 0
        %575 = vmatpush.bf16.msra.mxu0 0
        %576 = vmatpush.bf16.msra.mxu0 0
        %577 = vmatpush.bf16.msra.mxu0 0
        %578 = vmatpush.bf16.msra.mxu0 0
        %579 = vmatpush.bf16.msra.mxu0 %v570
        %580 = vmatmul.bf16.gmra.mxu0 %v479
        %v581 = vpop.f32.mrf.mxu0
        %v582 = vadd.f32 0.0, %v581
        %v583 = vpop.f32.mrf.mxu0
        %584 = vdwg.mxu0
        %vm585 = vcmp.ge.f32.partialorder %v582, 0.0
        %v586 = vmul.f32 %v582, 0.2
        %v587 = vsel %vm585, %v582, %v586
        %v588 = vmax.f32 %v565, %v587
        %v589 = vld [vmem:[#allocation2] sm:$0xff]
        %v590 = vld [vmem:[#allocation2 + $0x8] sm:$0xff]
        %v591 = vpack.c.bf16 %v588, %v588
        %v592 = vld [vmem:[%s6] sm:$0xff]
        %v593 = vld [vmem:[%s6 + $0x8] sm:$0xff]
        %v596 = vunpack.c.l.b16 %v592
        %v597 = vunpack.c.h.b16 %v592
        %v598 = vunpack.c.l.b16 %v593
        %v599 = vunpack.c.h.b16 %v593
        %v600 = vpack.c.b16 %v598, %v596
        %v601 = vpack.c.b16 %v599, %v597
        %v605 = vsel %vm477, %v591, 0
        %607 = vmatpush.bf16.msra.mxu0 0
        %608 = vmatpush.bf16.msra.mxu0 0
        %609 = vmatpush.bf16.msra.mxu0 0
        %610 = vmatpush.bf16.msra.mxu0 0
        %611 = vmatpush.bf16.msra.mxu0 0
        %612 = vmatpush.bf16.msra.mxu0 0
        %613 = vmatpush.bf16.msra.mxu0 0
        %614 = vmatpush.bf16.msra.mxu0 %v600
        %615 = vmatmul.bf16.gmra.mxu0 %v605
        %v616 = vpop.f32.mrf.mxu0
        %v617 = vadd.f32 0.0, %v616
        %v618 = vpop.f32.mrf.mxu0
        %619 = vdwg.mxu0
        %620 = vmatpush.bf16.msra.mxu0 0
        %621 = vmatpush.bf16.msra.mxu0 0
        %622 = vmatpush.bf16.msra.mxu0 0
        %623 = vmatpush.bf16.msra.mxu0 0
        %624 = vmatpush.bf16.msra.mxu0 0
        %625 = vmatpush.bf16.msra.mxu0 0
        %626 = vmatpush.bf16.msra.mxu0 0
        %627 = vmatpush.bf16.msra.mxu0 %v601
        %628 = vmatmul.bf16.gmra.mxu0 %v605
        %v629 = vpop.f32.mrf.mxu0
        %v630 = vadd.f32 0.0, %v629
        %v631 = vpop.f32.mrf.mxu0
        %632 = vdwg.mxu0
        %v633 = vadd.f32 %v589, %v617
        %v634 = vadd.f32 %v590, %v630
        %635 = vst [vmem:[#allocation2] sm:$0xff] %v633
        %636 = vst [vmem:[#allocation2 + $0x8] sm:$0xff] %v634
      $region56: #{hd_gconv_forward.3} parent=47 // pred_fallthru
        _
      %v637 = vld [vmem:[%s407] sm:$0xff]
      %v638 = vld [vmem:[%s421] sm:$0xff]
      %v639 = vld [vmem:[%s421 + $0x8] sm:$0xff]
      %v640 = vld [vmem:[%s421 + $0x10] sm:$0xff]
      %v641 = vld [vmem:[%s421 + $0x18] sm:$0xff]
      %v642 = vld [vmem:[%s421 + $0x20] sm:$0xff]
      %v643 = vld [vmem:[%s421 + $0x28] sm:$0xff]
      %v644 = vld [vmem:[%s421 + $0x30] sm:$0xff]
      %v645 = vld [vmem:[%s421 + $0x38] sm:$0xff]
      %v646 = vld [vmem:[%s421 + $0x40] sm:$0xff]
      %v647 = vld [vmem:[%s421 + $0x48] sm:$0xff]
      %v648 = vld [vmem:[%s421 + $0x50] sm:$0xff]
      %v649 = vld [vmem:[%s421 + $0x58] sm:$0xff]
      %v650 = vld [vmem:[%s421 + $0x60] sm:$0xff]
      %v651 = vld [vmem:[%s421 + $0x68] sm:$0xff]
      %v652 = vld [vmem:[%s421 + $0x70] sm:$0xff]
      %v653 = vld [vmem:[%s421 + $0x78] sm:$0xff]
      %v654 = vld [vmem:[%s421 + $0x80] sm:$0xff]
      %v655 = vld [vmem:[%s421 + $0x88] sm:$0xff]
      %v656 = vld [vmem:[%s421 + $0x90] sm:$0xff]
      %v657 = vld [vmem:[%s421 + $0x98] sm:$0xff]
      %v658 = vld [vmem:[%s421 + $0xa0] sm:$0xff]
      %v659 = vld [vmem:[%s421 + $0xa8] sm:$0xff]
      %v660 = vld [vmem:[%s421 + $0xb0] sm:$0xff]
      %v661 = vld [vmem:[%s421 + $0xb8] sm:$0xff]
      %v662 = vld [vmem:[%s421 + $0xc0] sm:$0xff]
      %v663 = vld [vmem:[%s421 + $0xc8] sm:$0xff]
      %v664 = vld [vmem:[%s421 + $0xd0] sm:$0xff]
      %v665 = vld [vmem:[%s421 + $0xd8] sm:$0xff]
      %v666 = vld [vmem:[%s421 + $0xe0] sm:$0xff]
      %v667 = vld [vmem:[%s421 + $0xe8] sm:$0xff]
      %v668 = vld [vmem:[%s421 + $0xf0] sm:$0xff]
      %v669 = vld [vmem:[%s421 + $0xf8] sm:$0xff]
      %v671 = vunpack.c.l.b16 %v637
      %v672 = vunpack.c.h.b16 %v637
      %v673 = vpack.c.b16 %v671, %v671
      %v674 = vpack.c.b16 %v672, %v672
      %v709 = vunpack.c.l.b16 %v638
      %v710 = vunpack.c.h.b16 %v638
      %v711 = vunpack.c.l.b16 %v639
      %v712 = vunpack.c.h.b16 %v639
      %v713 = vunpack.c.l.b16 %v640
      %v714 = vunpack.c.h.b16 %v640
      %v715 = vunpack.c.l.b16 %v641
      %v716 = vunpack.c.h.b16 %v641
      %v717 = vunpack.c.l.b16 %v642
      %v718 = vunpack.c.h.b16 %v642
      %v719 = vunpack.c.l.b16 %v643
      %v720 = vunpack.c.h.b16 %v643
      %v721 = vunpack.c.l.b16 %v644
      %v722 = vunpack.c.h.b16 %v644
      %v723 = vunpack.c.l.b16 %v645
      %v724 = vunpack.c.h.b16 %v645
      %v725 = vunpack.c.l.b16 %v646
      %v726 = vunpack.c.h.b16 %v646
      %v727 = vunpack.c.l.b16 %v647
      %v728 = vunpack.c.h.b16 %v647
      %v729 = vunpack.c.l.b16 %v648
      %v730 = vunpack.c.h.b16 %v648
      %v731 = vunpack.c.l.b16 %v649
      %v732 = vunpack.c.h.b16 %v649
      %v733 = vunpack.c.l.b16 %v650
      %v734 = vunpack.c.h.b16 %v650
      %v735 = vunpack.c.l.b16 %v651
      %v736 = vunpack.c.h.b16 %v651
      %v737 = vunpack.c.l.b16 %v652
      %v738 = vunpack.c.h.b16 %v652
      %v739 = vunpack.c.l.b16 %v653
      %v740 = vunpack.c.h.b16 %v653
      %v741 = vunpack.c.l.b16 %v654
      %v742 = vunpack.c.h.b16 %v654
      %v743 = vunpack.c.l.b16 %v655
      %v744 = vunpack.c.h.b16 %v655
      %v745 = vunpack.c.l.b16 %v656
      %v746 = vunpack.c.h.b16 %v656
      %v747 = vunpack.c.l.b16 %v657
      %v748 = vunpack.c.h.b16 %v657
      %v749 = vunpack.c.l.b16 %v658
      %v750 = vunpack.c.h.b16 %v658
      %v751 = vunpack.c.l.b16 %v659
      %v752 = vunpack.c.h.b16 %v659
      %v753 = vunpack.c.l.b16 %v660
      %v754 = vunpack.c.h.b16 %v660
      %v755 = vunpack.c.l.b16 %v661
      %v756 = vunpack.c.h.b16 %v661
      %v757 = vunpack.c.l.b16 %v662
      %v758 = vunpack.c.h.b16 %v662
      %v759 = vunpack.c.l.b16 %v663
      %v760 = vunpack.c.h.b16 %v663
      %v761 = vunpack.c.l.b16 %v664
      %v762 = vunpack.c.h.b16 %v664
      %v763 = vunpack.c.l.b16 %v665
      %v764 = vunpack.c.h.b16 %v665
      %v765 = vunpack.c.l.b16 %v666
      %v766 = vunpack.c.h.b16 %v666
      %v767 = vunpack.c.l.b16 %v667
      %v768 = vunpack.c.h.b16 %v667
      %v769 = vunpack.c.l.b16 %v668
      %v770 = vunpack.c.h.b16 %v668
      %v771 = vunpack.c.l.b16 %v669
      %v772 = vunpack.c.h.b16 %v669
      %v773 = vpack.c.b16 %v711, %v709
      %v774 = vpack.c.b16 %v712, %v710
      %v775 = vpack.c.b16 %v715, %v713
      %v776 = vpack.c.b16 %v716, %v714
      %v777 = vpack.c.b16 %v719, %v717
      %v778 = vpack.c.b16 %v720, %v718
      %v779 = vpack.c.b16 %v723, %v721
      %v780 = vpack.c.b16 %v724, %v722
      %v781 = vpack.c.b16 %v727, %v725
      %v782 = vpack.c.b16 %v728, %v726
      %v783 = vpack.c.b16 %v731, %v729
      %v784 = vpack.c.b16 %v732, %v730
      %v785 = vpack.c.b16 %v735, %v733
      %v786 = vpack.c.b16 %v736, %v734
      %v787 = vpack.c.b16 %v739, %v737
      %v788 = vpack.c.b16 %v740, %v738
      %v789 = vpack.c.b16 %v743, %v741
      %v790 = vpack.c.b16 %v744, %v742
      %v791 = vpack.c.b16 %v747, %v745
      %v792 = vpack.c.b16 %v748, %v746
      %v793 = vpack.c.b16 %v751, %v749
      %v794 = vpack.c.b16 %v752, %v750
      %v795 = vpack.c.b16 %v755, %v753
      %v796 = vpack.c.b16 %v756, %v754
      %v797 = vpack.c.b16 %v759, %v757
      %v798 = vpack.c.b16 %v760, %v758
      %v799 = vpack.c.b16 %v763, %v761
      %v800 = vpack.c.b16 %v764, %v762
      %v801 = vpack.c.b16 %v767, %v765
      %v802 = vpack.c.b16 %v768, %v766
      %v803 = vpack.c.b16 %v771, %v769
      %v804 = vpack.c.b16 %v772, %v770
      %837 = vmatpush.bf16.msra.mxu0 %v787
      %838 = vmatpush.bf16.msra.mxu0 %v785
      %839 = vmatpush.bf16.msra.mxu0 %v783
      %840 = vmatpush.bf16.msra.mxu0 %v781
      %841 = vmatpush.bf16.msra.mxu0 %v779
      %842 = vmatpush.bf16.msra.mxu0 %v777
      %843 = vmatpush.bf16.msra.mxu0 %v775
      %844 = vmatpush.bf16.msra.mxu0 %v773
      %845 = vmatmul.bf16.gmra.mxu0 %v673
      %v846 = vpop.f32.mrf.mxu0
      %v847 = vadd.f32 0.0, %v846
      %v848 = vpop.f32.mrf.mxu0
      %849 = vdwg.mxu0
      %850 = vmatpush.bf16.msra.mxu0 %v803
      %851 = vmatpush.bf16.msra.mxu0 %v801
      %852 = vmatpush.bf16.msra.mxu0 %v799
      %853 = vmatpush.bf16.msra.mxu0 %v797
      %854 = vmatpush.bf16.msra.mxu0 %v795
      %855 = vmatpush.bf16.msra.mxu0 %v793
      %856 = vmatpush.bf16.msra.mxu0 %v791
      %857 = vmatpush.bf16.msra.mxu0 %v789
      %858 = vmatmul.bf16.gmra.mxu0 %v674
      %v859 = vpop.f32.mrf.mxu0
      %v860 = vadd.f32 %v847, %v859
      %v861 = vpop.f32.mrf.mxu0
      %862 = vdwg.mxu0
      %863 = vmatpush.bf16.msra.mxu0 %v788
      %864 = vmatpush.bf16.msra.mxu0 %v786
      %865 = vmatpush.bf16.msra.mxu0 %v784
      %866 = vmatpush.bf16.msra.mxu0 %v782
      %867 = vmatpush.bf16.msra.mxu0 %v780
      %868 = vmatpush.bf16.msra.mxu0 %v778
      %869 = vmatpush.bf16.msra.mxu0 %v776
      %870 = vmatpush.bf16.msra.mxu0 %v774
      %871 = vmatmul.bf16.gmra.mxu0 %v673
      %v872 = vpop.f32.mrf.mxu0
      %v873 = vadd.f32 0.0, %v872
      %v874 = vpop.f32.mrf.mxu0
      %875 = vdwg.mxu0
      %876 = vmatpush.bf16.msra.mxu0 %v804
      %877 = vmatpush.bf16.msra.mxu0 %v802
      %878 = vmatpush.bf16.msra.mxu0 %v800
      %879 = vmatpush.bf16.msra.mxu0 %v798
      %880 = vmatpush.bf16.msra.mxu0 %v796
      %881 = vmatpush.bf16.msra.mxu0 %v794
      %882 = vmatpush.bf16.msra.mxu0 %v792
      %883 = vmatpush.bf16.msra.mxu0 %v790
      %884 = vmatmul.bf16.gmra.mxu0 %v674
      %v885 = vpop.f32.mrf.mxu0
      %v886 = vadd.f32 %v873, %v885
      %v887 = vpop.f32.mrf.mxu0
      %888 = vdwg.mxu0
      %v889 = vld [vmem:[#allocation2] sm:$0xff]
      %v890 = vld [vmem:[#allocation2 + $0x8] sm:$0xff]
      %v891 = vld [vmem:[%s429] sm:$0xf]
      %v892 = vpack.c.bf16 %v860, %v860
      %v893 = vpack.c.bf16 %v886, %v886
      %vm894 = vcmask 64512
      %v896 = vsel %vm894, %v891, 0
      %vm898 = vcmask 1043456
      %v900 = vsel %vm898, %v892, 0
      %v903 = vsel %vm898, %v893, 0
      %905 = vmatpush.bf16.msra.mxu0 0
      %906 = vmatpush.bf16.msra.mxu0 0
      %907 = vmatpush.bf16.msra.mxu0 0
      %908 = vmatpush.bf16.msra.mxu0 0
      %909 = vmatpush.bf16.msra.mxu0 0
      %910 = vmatpush.bf16.msra.mxu0 0
      %911 = vmatpush.bf16.msra.mxu0 0
      %912 = vmatpush.bf16.msra.mxu0 %v900
      %913 = vmatmul.bf16.gmra.mxu0 %v896
      %v914 = vpop.f32.mrf.mxu0
      %v915 = vadd.f32 0.0, %v914
      %v916 = vpop.f32.mrf.mxu0
      %917 = vdwg.mxu0
      %918 = vmatpush.bf16.msra.mxu0 0
      %919 = vmatpush.bf16.msra.mxu0 0
      %920 = vmatpush.bf16.msra.mxu0 0
      %921 = vmatpush.bf16.msra.mxu0 0
      %922 = vmatpush.bf16.msra.mxu0 0
      %923 = vmatpush.bf16.msra.mxu0 0
      %924 = vmatpush.bf16.msra.mxu0 0
      %925 = vmatpush.bf16.msra.mxu0 %v903
      %926 = vmatmul.bf16.gmra.mxu0 %v896
      %v927 = vpop.f32.mrf.mxu0
      %v928 = vadd.f32 0.0, %v927
      %v929 = vpop.f32.mrf.mxu0
      %930 = vdwg.mxu0
      %v931 = vadd.f32 %v889, %v915
      %v932 = vadd.f32 %v890, %v928
      %933 = vst [vmem:[#allocation2] sm:$0xff] %v931
      %934 = vst [vmem:[#allocation2 + $0x8] sm:$0xff] %v932
      %p935 = scmp.eq.s32.totalorder %s24, 1
      %p936 = scmp.eq.s32.totalorder %s25, 9
      %p937 = pnand %p935, %p936
      %p938 = pneg %p937
      // Predicated region
      $region57: #{hd_gconv_forward.3} parent=47 // pred_check
        _
      $region58: #{hd_gconv_forward.3} parent=47 // pred_check_branch
        %940 = sbr.rel (%p937) target = $region60
      $region59: #{hd_gconv_forward.3} parent=47 // pred_region
        %v941 = vld [vmem:[#allocation2] sm:$0xff]
        %v942 = vld [vmem:[#allocation2 + $0x8] sm:$0xff]
        %v943 = vmul.f32 %v941, 9.99995e-07
        %v944 = vmul.f32 %v942, 9.99995e-07
        %v945 = vld [vmem:[%s412] sm:$0xff]
        %v946 = vunpack.c.l.bf16 %v945
        %v947 = vunpack.c.h.bf16 %v945
        %v948 = vadd.f32 %v943, %v946
        %v949 = vadd.f32 %v944, %v947
        %v950 = vmax.f32 %v948, 0.0
        %v951 = vmax.f32 %v949, 0.0
        %952 = vst [vmem:[%s447] sm:$0xff] %v950
        %953 = vst [vmem:[%s447 + $0x8] sm:$0xff] %v951
      $region60: #{hd_gconv_forward.3} parent=47 // pred_fallthru
        _
      %p954 = scmp.lt.s32.totalorder %s23, 1
      %s955 = scalar_select %p954, %s23, 1
      %s956 = smul.addr %s955, 2
      %s957 = smul.addr %s956, 8
      %s958 = scalar_lea.vmem %s7, %s957
      // Predicated region
      $region61: #{hd_gconv_forward.3} parent=47 // pred_check
        %p959 = pneg %p240
      $region62: #{hd_gconv_forward.3} parent=47 // pred_check_branch
        %961 = sbr.rel (%p959) target = $region64
      $region63: #{hd_gconv_forward.3} parent=47 // pred_region
        _
      $region64: #{hd_gconv_forward.3} parent=47 // pred_fallthru
        _
    $region48: #{hd_gconv_forward.3} parent=5 // pred_fallthru
      _
    %p962 = scmp.le.s32.totalorder 2, %s13
    // Predicated region
    $region65: #{hd_gconv_forward.3} parent=5 // pred_check
      %p963 = pneg %p962
    $region66: #{hd_gconv_forward.3} parent=5 // pred_check_branch
      %965 = sbr.rel (%p963) target = $region68
    $region67: #{hd_gconv_forward.3} parent=5 // pred_region
      %s966 = ssub.s32 %s13, 2
      // Predicated region
      $region69: #{hd_gconv_forward.3} parent=67 // pred_check
        %p967 = pneg %p246
      $region70: #{hd_gconv_forward.3} parent=67 // pred_check_branch
        %969 = sbr.rel (%p967) target = $region72
      $region71: #{hd_gconv_forward.3} parent=67 // pred_region
        %p970 = scmp.lt.s32.totalorder %s26, 1
        %s971 = scalar_select %p970, %s26, 1
        %s972 = smul.addr %s971, 2
        %s973 = smul.addr %s972, 8
        %s974 = scalar_lea.vmem %s7, %s973
      $region72: #{hd_gconv_forward.3} parent=67 // pred_fallthru
        _
    $region68: #{hd_gconv_forward.3} parent=5 // pred_fallthru
      _
  $region6: #{hd_gconv_forward.3} parent=0 // loop_footer
    %s17 = sadd.s32 1, %s13
  $region7: #{hd_gconv_forward.3} parent=0 // loop_footer_branch
    %12 = sbr.rel target = $region3
  $region8: #{hd_gconv_forward.3} parent=0 // loop_exit
    _

</llo_original>
